<compile_context>
chip_gen: v6e
topology: v6e:2x2x1
jax: 0.10.0
libtpu: 0.0.40
codegen_flags: <defaults>
</compile_context>

<pallas_src>
import functools

import jax
import jax.numpy as jnp
from jax.experimental import pallas as pl
from jax.experimental.pallas import tpu as pltpu

EPS = 1e-8


def fused_tcn_kernel(x_ref, w1_ref, a1_ref, g1_ref, b1_ref,
                     wdw_ref, a2_ref, g2_ref, b2_ref, wpw_ref, o_ref,
                     *, X, P, T, dilations, mxu_dtype):
    """Whole X-block TemporalBlock chain for ONE sample (grid axis 0 = batch).

    x_ref   : (Bc, T)      this sample's activations (VMEM)
    w1_ref  : (X, H, Bc)   1x1 conv weights (Bc -> H), pre-cast to mxu_dtype
    a1, a2  : (X, 1, 1)    PReLU slopes
    g1, b1  : (X, H, 1)    gLN params after the first PReLU
    wdw_ref : (X, H, P)    depthwise conv weights (groups = H), f32
    g2, b2  : (X, H, 1)    gLN params inside the depthwise-separable conv
    wpw_ref : (X, Bc, H)   pointwise 1x1 conv weights (H -> Bc), mxu_dtype
    o_ref   : (Bc, T)      output block for this sample
    """
    H = w1_ref.shape[1]
    inv_cnt = 1.0 / float(H * T)
    t_loc = jax.lax.broadcasted_iota(jnp.int32, (1, T), 1)     # lane index

    act = x_ref[...].astype(jnp.float32)        # resident for the whole chain

    def prelu(y, a):                             # a: (1, 1) slope
        return jnp.where(y >= 0, y, a * y)

    def gln(y, gamma, beta):
        # Per-sample global layer norm over (channels, time); one pass with
        # sum / sum-of-squares, variance clamped at 0, rsqrt on the EUP.
        mean = jnp.sum(y) * inv_cnt
        ex2 = jnp.sum(y * y) * inv_cnt
        var = jnp.maximum(ex2 - mean * mean, 0.0)
        scale = gamma * jax.lax.rsqrt(var + EPS)                # (H, 1)
        return scale * (y - mean) + beta

    def depthwise(y, wdw, dil, pad):
        # out[c, t] = sum_k wdw[c, k] * y[c, t + k*dil - pad], zeros outside
        # [0, T).  Shifts ride the XLU (pltpu.roll); one compare per edge tap.
        z = jnp.zeros_like(y)
        for k in range(P):                                      # static unroll
            s = k * dil - pad
            if s == 0:
                tap = y
            else:
                tap = pltpu.roll(y, shift=(-s) % T, axis=1)
                if s < 0:
                    tap = jnp.where(t_loc >= -s, tap, 0.0)
                else:
                    tap = jnp.where(t_loc < T - s, tap, 0.0)
            z = z + wdw[:, k:k + 1] * tap
        return z

    # TODO(synk): move this static unroll onto an 'arbitrary' X grid axis
    # (weights indexed by the X grid coordinate -> double-buffered weight DMA,
    # bounded vreg live ranges at H=512) once dynamic-dilation depthwise
    # (dynamic pltpu.roll shift) is validated.
    for i in range(X):
        dil = dilations[i]
        pad = (P - 1) * dil // 2

        # conv1x1 on the MXU: (H, Bc) @ (Bc, T) -> (H, T), f32 accumulation.
        y = jnp.dot(w1_ref[i], act.astype(mxu_dtype),
                    preferred_element_type=jnp.float32)
        y = gln(prelu(y, a1_ref[i]), g1_ref[i], b1_ref[i])

        # dilated depthwise conv -> PReLU -> gLN (VPU/XLU path, f32).
        z = depthwise(y, wdw_ref[i], dil, pad)
        z = gln(prelu(z, a2_ref[i]), g2_ref[i], b2_ref[i])

        # pointwise conv back to Bc channels + residual.
        act = act + jnp.dot(wpw_ref[i], z.astype(mxu_dtype),
                            preferred_element_type=jnp.float32)

    o_ref[...] = act


def _vmem_limit_bytes():
    """Raise the scoped-VMEM budget (32/16 MiB defaults on v6e/v5e are too
    small for the fully-resident chain at production T) while staying under
    physical capacity (64 MiB on v7x)."""
    try:
        phys = pltpu.get_tpu_info().vmem_capacity_bytes
        return int(min(100 * 2 ** 20, 0.9 * phys))
    except Exception:
        return None   # keep compiler default; fine at small shapes


def tcn_block(x, params, P, *, mxu_dtype=jnp.bfloat16):
    """X chained TemporalBlocks (dilation 2**i), fused into one pallas_call.

    x: (N, Bc, T) float32.  mxu_dtype=bfloat16 is the v6e/v7x production
    default (weights are pre-cast once here); pass jnp.float32 on v5e or when
    bit-accuracy against an f32 reference matters.
    """
    N, Bc, T = x.shape
    X = len(params)
    H = params[0]["w1"].shape[0]

    W1 = jnp.stack([p["w1"] for p in params]).astype(mxu_dtype)       # (X, H, Bc)
    A1 = jnp.stack([p["a1"] for p in params]).reshape(X, 1, 1).astype(jnp.float32)
    G1 = jnp.stack([p["g1"] for p in params]).astype(jnp.float32)     # (X, H, 1)
    B1 = jnp.stack([p["b1"] for p in params]).astype(jnp.float32)
    WDW = jnp.stack([p["wdw"] for p in params]).astype(jnp.float32)   # (X, H, P)
    A2 = jnp.stack([p["a2"] for p in params]).reshape(X, 1, 1).astype(jnp.float32)
    G2 = jnp.stack([p["g2"] for p in params]).astype(jnp.float32)
    B2 = jnp.stack([p["b2"] for p in params]).astype(jnp.float32)
    WPW = jnp.stack([p["wpw"] for p in params]).astype(mxu_dtype)     # (X, Bc, H)

    kernel = functools.partial(
        fused_tcn_kernel, X=X, P=P, T=T,
        dilations=tuple(2 ** i for i in range(X)), mxu_dtype=mxu_dtype)

    full = lambda n: (0, 0, 0)            # weights: fetched once, stay resident
    grid_spec = pltpu.PrefetchScalarGridSpec(
        num_scalar_prefetch=0,
        grid=(N,),                        # one sample per grid step
        in_specs=[
            pl.BlockSpec((None, Bc, T), lambda n: (n, 0, 0)),   # x (per sample)
            pl.BlockSpec((X, H, Bc), full),                     # W1
            pl.BlockSpec((X, 1, 1), full),                      # A1
            pl.BlockSpec((X, H, 1), full),                      # G1
            pl.BlockSpec((X, H, 1), full),                      # B1
            pl.BlockSpec((X, H, P), full),                      # WDW
            pl.BlockSpec((X, 1, 1), full),                      # A2
            pl.BlockSpec((X, H, 1), full),                      # G2
            pl.BlockSpec((X, H, 1), full),                      # B2
            pl.BlockSpec((X, Bc, H), full),                     # WPW
        ],
        out_specs=pl.BlockSpec((None, Bc, T), lambda n: (n, 0, 0)),
    )

    weight_bytes = sum(int(w.size) * w.dtype.itemsize
                       for w in (W1, A1, G1, B1, WDW, A2, G2, B2, WPW))
    cost = pl.CostEstimate(
        flops=2 * N * X * T * H * (2 * Bc + P + 8),
        transcendentals=2 * N * X,                 # one rsqrt per gLN
        bytes_accessed=2 * N * Bc * T * 4 + weight_bytes)

    cp_kwargs = dict(dimension_semantics=("parallel",))   # N shards across TCs
    vmem_limit = _vmem_limit_bytes()
    if vmem_limit is not None:
        cp_kwargs["vmem_limit_bytes"] = vmem_limit

    # TODO(synk): for production T (>= ~8k) on v7x's 64 MiB VMEM, add a T-tile
    # grid axis with a (P-1)*dil_max/2 halo and split each gLN into a stats
    # pass + normalize pass (partial sums carried in scratch); on v7x the big
    # intermediates (y/z/act) can also stay in bf16 (native bf16 VPU).
    return pl.pallas_call(
        kernel,
        out_shape=jax.ShapeDtypeStruct((N, Bc, T), jnp.float32),
        grid_spec=grid_spec,
        compiler_params=pltpu.CompilerParams(**cp_kwargs),
        cost_estimate=cost,
    )(x.astype(jnp.float32), W1, A1, G1, B1, WDW, A2, G2, B2, WPW)


def init_tcn_params(key, X, P, Bc, H):
    """Deterministic synthetic init; gamma=1, beta=0, PReLU slope=0.25."""
    params = []
    for _ in range(X):
        key, k1, k2, k3 = jax.random.split(key, 4)
        params.append(dict(
            w1=jax.random.normal(k1, (H, Bc), jnp.float32) / jnp.sqrt(Bc),
            a1=jnp.float32(0.25),
            g1=jnp.ones((H, 1), jnp.float32),
            b1=jnp.zeros((H, 1), jnp.float32),
            wdw=jax.random.normal(k2, (H, P), jnp.float32) / jnp.sqrt(P),
            a2=jnp.float32(0.25),
            g2=jnp.ones((H, 1), jnp.float32),
            b2=jnp.zeros((H, 1), jnp.float32),
            wpw=jax.random.normal(k3, (Bc, H), jnp.float32) / jnp.sqrt(H),
        ))
    return params


# ---------- pure-JAX reference (mirrors the PyTorch TCN_block forward) ----------
def _gln_ref(y, gamma, beta):
    mean = jnp.mean(y, axis=(1, 2), keepdims=True)
    var = jnp.mean((y - mean) ** 2, axis=(1, 2), keepdims=True)
    return gamma[None] * (y - mean) / jnp.sqrt(var + EPS) + beta[None]


def tcn_block_ref(x, params, P):
    hp = jax.lax.Precision.HIGHEST
    for i, p in enumerate(params):
        dil = 2 ** i
        pad = (P - 1) * dil // 2
        res = x
        y = jnp.einsum("hb,nbt->nht", p["w1"], x, precision=hp)
        y = jnp.where(y >= 0, y, p["a1"] * y)
        y = _gln_ref(y, p["g1"], p["b1"])
        ypad = jnp.pad(y, ((0, 0), (0, 0), (pad, pad)))
        z = jnp.zeros_like(y)
        for k in range(P):
            tap = jax.lax.slice_in_dim(ypad, k * dil, k * dil + y.shape[-1], axis=2)
            z = z + p["wdw"][None, :, k, None] * tap
        z = jnp.where(z >= 0, z, p["a2"] * z)
        z = _gln_ref(z, p["g2"], p["b2"])
        x = res + jnp.einsum("bh,nht->nbt", p["wpw"], z, precision=hp)
    return x


if __name__ == "__main__":
    # TCN_block(X=3, P=3, B=8, H=16) on input (N=2, Bc=8, T=128)
    X, P, Bc, H = 3, 3, 8, 16
    N, T = 2, 128

    key = jax.random.PRNGKey(0)
    kx, kp = jax.random.split(key)
    x = jax.random.normal(kx, (N, Bc, T), jnp.float32)
    params = init_tcn_params(kp, X, P, Bc, H)

    # f32 MXU path: correctness check against the pure-JAX reference.
    run_f32 = jax.jit(functools.partial(tcn_block, P=P, mxu_dtype=jnp.float32))
    out = jax.block_until_ready(run_f32(x, params))
    assert out.shape == (N, Bc, T), out.shape
    assert bool(jnp.all(jnp.isfinite(out)))
    ref = tcn_block_ref(x, params, P)
    assert bool(jnp.allclose(out, ref, rtol=5e-2, atol=5e-2)), \
        float(jnp.max(jnp.abs(out - ref)))

    # bf16 MXU path (v6e/v7x production default): compile, run, sanity-check.
    run_bf16 = jax.jit(functools.partial(tcn_block, P=P))
    out_bf16 = jax.block_until_ready(run_bf16(x, params))
    assert out_bf16.shape == (N, Bc, T)
    assert bool(jnp.all(jnp.isfinite(out_bf16)))

    print("KERNEL_OK")
</pallas_src>

<mosaic_0001>
module attributes {stable_mosaic.version = 11 : i64} {
  func.func @fused_tcn_kernel(%arg0: i32, %arg1: memref<1x8x128xf32, #tpu.memory_space<vmem>>, %arg2: memref<3x16x8xf32, #tpu.memory_space<vmem>>, %arg3: memref<3x1x1xf32, #tpu.memory_space<vmem>>, %arg4: memref<3x16x1xf32, #tpu.memory_space<vmem>>, %arg5: memref<3x16x1xf32, #tpu.memory_space<vmem>>, %arg6: memref<3x16x3xf32, #tpu.memory_space<vmem>>, %arg7: memref<3x1x1xf32, #tpu.memory_space<vmem>>, %arg8: memref<3x16x1xf32, #tpu.memory_space<vmem>>, %arg9: memref<3x16x1xf32, #tpu.memory_space<vmem>>, %arg10: memref<3x8x16xf32, #tpu.memory_space<vmem>>, %arg11: memref<1x8x128xf32, #tpu.memory_space<vmem>>) attributes {dimension_semantics = [#tpu.dimension_semantics<parallel>], iteration_bounds = array<i64: 2>, scalar_prefetch = 0 : i64, scratch_operands = 0 : i64, tpu.core_type = #tpu.core_type<tc>, window_params = [{transform_indices = @transform_0, window_bounds = array<i64: 1, 8, 128>}, {pipeline_mode = #tpu.pipeline_mode<synchronous>, transform_indices = @transform_1, window_bounds = array<i64: 3, 16, 8>}, {pipeline_mode = #tpu.pipeline_mode<synchronous>, transform_indices = @transform_2, window_bounds = array<i64: 3, 1, 1>}, {pipeline_mode = #tpu.pipeline_mode<synchronous>, transform_indices = @transform_3, window_bounds = array<i64: 3, 16, 1>}, {pipeline_mode = #tpu.pipeline_mode<synchronous>, transform_indices = @transform_4, window_bounds = array<i64: 3, 16, 1>}, {pipeline_mode = #tpu.pipeline_mode<synchronous>, transform_indices = @transform_5, window_bounds = array<i64: 3, 16, 3>}, {pipeline_mode = #tpu.pipeline_mode<synchronous>, transform_indices = @transform_6, window_bounds = array<i64: 3, 1, 1>}, {pipeline_mode = #tpu.pipeline_mode<synchronous>, transform_indices = @transform_7, window_bounds = array<i64: 3, 16, 1>}, {pipeline_mode = #tpu.pipeline_mode<synchronous>, transform_indices = @transform_8, window_bounds = array<i64: 3, 16, 1>}, {pipeline_mode = #tpu.pipeline_mode<synchronous>, transform_indices = @transform_9, window_bounds = array<i64: 3, 8, 16>}, {transform_indices = @transform_10, window_bounds = array<i64: 1, 8, 128>}]} {
    %0 = tpu.iota {dimensions = array<i32: 1>} : vector<1x128xi32>
    %c0 = arith.constant 0 : index
    %c0_0 = arith.constant 0 : index
    %c0_1 = arith.constant 0 : index
    %1 = vector.load %arg1[%c0, %c0_0, %c0_1] : memref<1x8x128xf32, #tpu.memory_space<vmem>>, vector<1x8x128xf32>
    %2 = vector.shape_cast %1 : vector<1x8x128xf32> to vector<8x128xf32>
    %c0_2 = arith.constant 0 : index
    %c0_3 = arith.constant 0 : index
    %c0_4 = arith.constant 0 : index
    %3 = vector.load %arg2[%c0_2, %c0_3, %c0_4] : memref<3x16x8xf32, #tpu.memory_space<vmem>>, vector<1x16x8xf32>
    %4 = vector.shape_cast %3 : vector<1x16x8xf32> to vector<16x8xf32>
    %cst = arith.constant dense<0.000000e+00> : vector<16x128xf32>
    %5 = tpu.matmul %4, %2, %cst {dimension_numbers = #tpu.dot_dimension_numbers<[1], [0], [0], [1], [0, 0, 1, 1], [], []>} : vector<16x8xf32>, vector<8x128xf32>, vector<16x128xf32> -> vector<16x128xf32>
    %c0_5 = arith.constant 0 : index
    %c0_6 = arith.constant 0 : index
    %c0_7 = arith.constant 0 : index
    %6 = vector.load %arg3[%c0_5, %c0_6, %c0_7] : memref<3x1x1xf32, #tpu.memory_space<vmem>>, vector<1x1x1xf32>
    %7 = vector.shape_cast %6 : vector<1x1x1xf32> to vector<1x1xf32>
    %cst_8 = arith.constant 0.000000e+00 : f32
    %8 = vector.broadcast %cst_8 : f32 to vector<16x128xf32>
    %9 = arith.cmpf oge, %5, %8 : vector<16x128xf32>
    %10 = vector.broadcast %7 : vector<1x1xf32> to vector<16x128xf32>
    %11 = arith.mulf %10, %5 : vector<16x128xf32>
    %12 = arith.select %9, %5, %11 : vector<16x128xi1>, vector<16x128xf32>
    %c0_9 = arith.constant 0 : index
    %c0_10 = arith.constant 0 : index
    %c0_11 = arith.constant 0 : index
    %13 = vector.load %arg4[%c0_9, %c0_10, %c0_11] : memref<3x16x1xf32, #tpu.memory_space<vmem>>, vector<1x16x1xf32>
    %14 = vector.shape_cast %13 : vector<1x16x1xf32> to vector<16x1xf32>
    %c0_12 = arith.constant 0 : index
    %c0_13 = arith.constant 0 : index
    %c0_14 = arith.constant 0 : index
    %15 = vector.load %arg5[%c0_12, %c0_13, %c0_14] : memref<3x16x1xf32, #tpu.memory_space<vmem>>, vector<1x16x1xf32>
    %16 = vector.shape_cast %15 : vector<1x16x1xf32> to vector<16x1xf32>
    %17 = vector.shape_cast %12 : vector<16x128xf32> to vector<1x16x128xf32>
    %cst_15 = arith.constant dense<0.000000e+00> : vector<1xf32>
    %18 = vector.multi_reduction <add>, %17, %cst_15 [1, 2] : vector<1x16x128xf32> to vector<1xf32>
    %19 = vector.shape_cast %18 : vector<1xf32> to vector<1x1x1xf32>
    %20 = vector.extract %19[0, 0, 0] : f32 from vector<1x1x1xf32>
    %cst_16 = arith.constant 4.8828125E-4 : f32
    %21 = arith.mulf %20, %cst_16 : f32
    %22 = arith.mulf %12, %12 : vector<16x128xf32>
    %23 = vector.shape_cast %22 : vector<16x128xf32> to vector<1x16x128xf32>
    %cst_17 = arith.constant dense<0.000000e+00> : vector<1xf32>
    %24 = vector.multi_reduction <add>, %23, %cst_17 [1, 2] : vector<1x16x128xf32> to vector<1xf32>
    %25 = vector.shape_cast %24 : vector<1xf32> to vector<1x1x1xf32>
    %26 = vector.extract %25[0, 0, 0] : f32 from vector<1x1x1xf32>
    %cst_18 = arith.constant 4.8828125E-4 : f32
    %27 = arith.mulf %26, %cst_18 : f32
    %28 = arith.mulf %21, %21 : f32
    %29 = arith.subf %27, %28 : f32
    %cst_19 = arith.constant 0.000000e+00 : f32
    %30 = arith.maximumf %29, %cst_19 : f32
    %cst_20 = arith.constant 9.99999993E-9 : f32
    %31 = arith.addf %30, %cst_20 : f32
    %32 = math.rsqrt %31 : f32
    %33 = vector.broadcast %32 : f32 to vector<16x1xf32>
    %34 = arith.mulf %14, %33 : vector<16x1xf32>
    %35 = vector.broadcast %21 : f32 to vector<16x128xf32>
    %36 = arith.subf %12, %35 : vector<16x128xf32>
    %37 = vector.broadcast %34 : vector<16x1xf32> to vector<16x128xf32>
    %38 = arith.mulf %37, %36 : vector<16x128xf32>
    %39 = vector.broadcast %16 : vector<16x1xf32> to vector<16x128xf32>
    %40 = arith.addf %38, %39 : vector<16x128xf32>
    %c0_21 = arith.constant 0 : index
    %c0_22 = arith.constant 0 : index
    %c0_23 = arith.constant 0 : index
    %41 = vector.load %arg6[%c0_21, %c0_22, %c0_23] : memref<3x16x3xf32, #tpu.memory_space<vmem>>, vector<1x16x3xf32>
    %42 = vector.shape_cast %41 : vector<1x16x3xf32> to vector<16x3xf32>
    %cst_24 = arith.constant 0.000000e+00 : f32
    %43 = vector.broadcast %cst_24 : f32 to vector<16x128xf32>
    %c1_i32 = arith.constant 1 : i32
    %44 = tpu.dynamic_rotate %40 by %c1_i32 dim 1 : vector<16x128xf32>, i32 -> vector<16x128xf32>
    %c1_i32_25 = arith.constant 1 : i32
    %45 = vector.broadcast %c1_i32_25 : i32 to vector<1x128xi32>
    %46 = arith.cmpi sge, %0, %45 : vector<1x128xi32>
    %cst_26 = arith.constant 0.000000e+00 : f32
    %47 = vector.shape_cast %46 : vector<1x128xi1> to vector<1x128xi1>
    %48 = vector.broadcast %47 : vector<1x128xi1> to vector<16x128xi1>
    %49 = vector.broadcast %cst_26 : f32 to vector<16x128xf32>
    %50 = arith.select %48, %44, %49 : vector<16x128xi1>, vector<16x128xf32>
    %51 = vector.extract_strided_slice %42 {offsets = [0, 0], sizes = [16, 1], strides = [1, 1]} : vector<16x3xf32> to vector<16x1xf32>
    %52 = vector.broadcast %51 : vector<16x1xf32> to vector<16x128xf32>
    %53 = arith.mulf %52, %50 : vector<16x128xf32>
    %54 = arith.addf %43, %53 : vector<16x128xf32>
    %55 = vector.extract_strided_slice %42 {offsets = [0, 1], sizes = [16, 1], strides = [1, 1]} : vector<16x3xf32> to vector<16x1xf32>
    %56 = vector.broadcast %55 : vector<16x1xf32> to vector<16x128xf32>
    %57 = arith.mulf %56, %40 : vector<16x128xf32>
    %58 = arith.addf %54, %57 : vector<16x128xf32>
    %c127_i32 = arith.constant 127 : i32
    %59 = tpu.dynamic_rotate %40 by %c127_i32 dim 1 : vector<16x128xf32>, i32 -> vector<16x128xf32>
    %c127_i32_27 = arith.constant 127 : i32
    %60 = vector.broadcast %c127_i32_27 : i32 to vector<1x128xi32>
    %61 = arith.cmpi slt, %0, %60 : vector<1x128xi32>
    %cst_28 = arith.constant 0.000000e+00 : f32
    %62 = vector.shape_cast %61 : vector<1x128xi1> to vector<1x128xi1>
    %63 = vector.broadcast %62 : vector<1x128xi1> to vector<16x128xi1>
    %64 = vector.broadcast %cst_28 : f32 to vector<16x128xf32>
    %65 = arith.select %63, %59, %64 : vector<16x128xi1>, vector<16x128xf32>
    %66 = vector.extract_strided_slice %42 {offsets = [0, 2], sizes = [16, 1], strides = [1, 1]} : vector<16x3xf32> to vector<16x1xf32>
    %67 = vector.broadcast %66 : vector<16x1xf32> to vector<16x128xf32>
    %68 = arith.mulf %67, %65 : vector<16x128xf32>
    %69 = arith.addf %58, %68 : vector<16x128xf32>
    %c0_29 = arith.constant 0 : index
    %c0_30 = arith.constant 0 : index
    %c0_31 = arith.constant 0 : index
    %70 = vector.load %arg7[%c0_29, %c0_30, %c0_31] : memref<3x1x1xf32, #tpu.memory_space<vmem>>, vector<1x1x1xf32>
    %71 = vector.shape_cast %70 : vector<1x1x1xf32> to vector<1x1xf32>
    %cst_32 = arith.constant 0.000000e+00 : f32
    %72 = vector.broadcast %cst_32 : f32 to vector<16x128xf32>
    %73 = arith.cmpf oge, %69, %72 : vector<16x128xf32>
    %74 = vector.broadcast %71 : vector<1x1xf32> to vector<16x128xf32>
    %75 = arith.mulf %74, %69 : vector<16x128xf32>
    %76 = arith.select %73, %69, %75 : vector<16x128xi1>, vector<16x128xf32>
    %c0_33 = arith.constant 0 : index
    %c0_34 = arith.constant 0 : index
    %c0_35 = arith.constant 0 : index
    %77 = vector.load %arg8[%c0_33, %c0_34, %c0_35] : memref<3x16x1xf32, #tpu.memory_space<vmem>>, vector<1x16x1xf32>
    %78 = vector.shape_cast %77 : vector<1x16x1xf32> to vector<16x1xf32>
    %c0_36 = arith.constant 0 : index
    %c0_37 = arith.constant 0 : index
    %c0_38 = arith.constant 0 : index
    %79 = vector.load %arg9[%c0_36, %c0_37, %c0_38] : memref<3x16x1xf32, #tpu.memory_space<vmem>>, vector<1x16x1xf32>
    %80 = vector.shape_cast %79 : vector<1x16x1xf32> to vector<16x1xf32>
    %81 = vector.shape_cast %76 : vector<16x128xf32> to vector<1x16x128xf32>
    %cst_39 = arith.constant dense<0.000000e+00> : vector<1xf32>
    %82 = vector.multi_reduction <add>, %81, %cst_39 [1, 2] : vector<1x16x128xf32> to vector<1xf32>
    %83 = vector.shape_cast %82 : vector<1xf32> to vector<1x1x1xf32>
    %84 = vector.extract %83[0, 0, 0] : f32 from vector<1x1x1xf32>
    %cst_40 = arith.constant 4.8828125E-4 : f32
    %85 = arith.mulf %84, %cst_40 : f32
    %86 = arith.mulf %76, %76 : vector<16x128xf32>
    %87 = vector.shape_cast %86 : vector<16x128xf32> to vector<1x16x128xf32>
    %cst_41 = arith.constant dense<0.000000e+00> : vector<1xf32>
    %88 = vector.multi_reduction <add>, %87, %cst_41 [1, 2] : vector<1x16x128xf32> to vector<1xf32>
    %89 = vector.shape_cast %88 : vector<1xf32> to vector<1x1x1xf32>
    %90 = vector.extract %89[0, 0, 0] : f32 from vector<1x1x1xf32>
    %cst_42 = arith.constant 4.8828125E-4 : f32
    %91 = arith.mulf %90, %cst_42 : f32
    %92 = arith.mulf %85, %85 : f32
    %93 = arith.subf %91, %92 : f32
    %cst_43 = arith.constant 0.000000e+00 : f32
    %94 = arith.maximumf %93, %cst_43 : f32
    %cst_44 = arith.constant 9.99999993E-9 : f32
    %95 = arith.addf %94, %cst_44 : f32
    %96 = math.rsqrt %95 : f32
    %97 = vector.broadcast %96 : f32 to vector<16x1xf32>
    %98 = arith.mulf %78, %97 : vector<16x1xf32>
    %99 = vector.broadcast %85 : f32 to vector<16x128xf32>
    %100 = arith.subf %76, %99 : vector<16x128xf32>
    %101 = vector.broadcast %98 : vector<16x1xf32> to vector<16x128xf32>
    %102 = arith.mulf %101, %100 : vector<16x128xf32>
    %103 = vector.broadcast %80 : vector<16x1xf32> to vector<16x128xf32>
    %104 = arith.addf %102, %103 : vector<16x128xf32>
    %c0_45 = arith.constant 0 : index
    %c0_46 = arith.constant 0 : index
    %c0_47 = arith.constant 0 : index
    %105 = vector.load %arg10[%c0_45, %c0_46, %c0_47] : memref<3x8x16xf32, #tpu.memory_space<vmem>>, vector<1x8x16xf32>
    %106 = vector.shape_cast %105 : vector<1x8x16xf32> to vector<8x16xf32>
    %cst_48 = arith.constant dense<0.000000e+00> : vector<8x128xf32>
    %107 = tpu.matmul %106, %104, %cst_48 {dimension_numbers = #tpu.dot_dimension_numbers<[1], [0], [0], [1], [0, 0, 1, 1], [], []>} : vector<8x16xf32>, vector<16x128xf32>, vector<8x128xf32> -> vector<8x128xf32>
    %108 = arith.addf %2, %107 : vector<8x128xf32>
    %c1 = arith.constant 1 : index
    %c0_49 = arith.constant 0 : index
    %c0_50 = arith.constant 0 : index
    %109 = vector.load %arg2[%c1, %c0_49, %c0_50] : memref<3x16x8xf32, #tpu.memory_space<vmem>>, vector<1x16x8xf32>
    %110 = vector.shape_cast %109 : vector<1x16x8xf32> to vector<16x8xf32>
    %cst_51 = arith.constant dense<0.000000e+00> : vector<16x128xf32>
    %111 = tpu.matmul %110, %108, %cst_51 {dimension_numbers = #tpu.dot_dimension_numbers<[1], [0], [0], [1], [0, 0, 1, 1], [], []>} : vector<16x8xf32>, vector<8x128xf32>, vector<16x128xf32> -> vector<16x128xf32>
    %c1_52 = arith.constant 1 : index
    %c0_53 = arith.constant 0 : index
    %c0_54 = arith.constant 0 : index
    %112 = vector.load %arg3[%c1_52, %c0_53, %c0_54] : memref<3x1x1xf32, #tpu.memory_space<vmem>>, vector<1x1x1xf32>
    %113 = vector.shape_cast %112 : vector<1x1x1xf32> to vector<1x1xf32>
    %cst_55 = arith.constant 0.000000e+00 : f32
    %114 = vector.broadcast %cst_55 : f32 to vector<16x128xf32>
    %115 = arith.cmpf oge, %111, %114 : vector<16x128xf32>
    %116 = vector.broadcast %113 : vector<1x1xf32> to vector<16x128xf32>
    %117 = arith.mulf %116, %111 : vector<16x128xf32>
    %118 = arith.select %115, %111, %117 : vector<16x128xi1>, vector<16x128xf32>
    %c1_56 = arith.constant 1 : index
    %c0_57 = arith.constant 0 : index
    %c0_58 = arith.constant 0 : index
    %119 = vector.load %arg4[%c1_56, %c0_57, %c0_58] : memref<3x16x1xf32, #tpu.memory_space<vmem>>, vector<1x16x1xf32>
    %120 = vector.shape_cast %119 : vector<1x16x1xf32> to vector<16x1xf32>
    %c1_59 = arith.constant 1 : index
    %c0_60 = arith.constant 0 : index
    %c0_61 = arith.constant 0 : index
    %121 = vector.load %arg5[%c1_59, %c0_60, %c0_61] : memref<3x16x1xf32, #tpu.memory_space<vmem>>, vector<1x16x1xf32>
    %122 = vector.shape_cast %121 : vector<1x16x1xf32> to vector<16x1xf32>
    %123 = vector.shape_cast %118 : vector<16x128xf32> to vector<1x16x128xf32>
    %cst_62 = arith.constant dense<0.000000e+00> : vector<1xf32>
    %124 = vector.multi_reduction <add>, %123, %cst_62 [1, 2] : vector<1x16x128xf32> to vector<1xf32>
    %125 = vector.shape_cast %124 : vector<1xf32> to vector<1x1x1xf32>
    %126 = vector.extract %125[0, 0, 0] : f32 from vector<1x1x1xf32>
    %cst_63 = arith.constant 4.8828125E-4 : f32
    %127 = arith.mulf %126, %cst_63 : f32
    %128 = arith.mulf %118, %118 : vector<16x128xf32>
    %129 = vector.shape_cast %128 : vector<16x128xf32> to vector<1x16x128xf32>
    %cst_64 = arith.constant dense<0.000000e+00> : vector<1xf32>
    %130 = vector.multi_reduction <add>, %129, %cst_64 [1, 2] : vector<1x16x128xf32> to vector<1xf32>
    %131 = vector.shape_cast %130 : vector<1xf32> to vector<1x1x1xf32>
    %132 = vector.extract %131[0, 0, 0] : f32 from vector<1x1x1xf32>
    %cst_65 = arith.constant 4.8828125E-4 : f32
    %133 = arith.mulf %132, %cst_65 : f32
    %134 = arith.mulf %127, %127 : f32
    %135 = arith.subf %133, %134 : f32
    %cst_66 = arith.constant 0.000000e+00 : f32
    %136 = arith.maximumf %135, %cst_66 : f32
    %cst_67 = arith.constant 9.99999993E-9 : f32
    %137 = arith.addf %136, %cst_67 : f32
    %138 = math.rsqrt %137 : f32
    %139 = vector.broadcast %138 : f32 to vector<16x1xf32>
    %140 = arith.mulf %120, %139 : vector<16x1xf32>
    %141 = vector.broadcast %127 : f32 to vector<16x128xf32>
    %142 = arith.subf %118, %141 : vector<16x128xf32>
    %143 = vector.broadcast %140 : vector<16x1xf32> to vector<16x128xf32>
    %144 = arith.mulf %143, %142 : vector<16x128xf32>
    %145 = vector.broadcast %122 : vector<16x1xf32> to vector<16x128xf32>
    %146 = arith.addf %144, %145 : vector<16x128xf32>
    %c1_68 = arith.constant 1 : index
    %c0_69 = arith.constant 0 : index
    %c0_70 = arith.constant 0 : index
    %147 = vector.load %arg6[%c1_68, %c0_69, %c0_70] : memref<3x16x3xf32, #tpu.memory_space<vmem>>, vector<1x16x3xf32>
    %148 = vector.shape_cast %147 : vector<1x16x3xf32> to vector<16x3xf32>
    %cst_71 = arith.constant 0.000000e+00 : f32
    %149 = vector.broadcast %cst_71 : f32 to vector<16x128xf32>
    %c2_i32 = arith.constant 2 : i32
    %150 = tpu.dynamic_rotate %146 by %c2_i32 dim 1 : vector<16x128xf32>, i32 -> vector<16x128xf32>
    %c2_i32_72 = arith.constant 2 : i32
    %151 = vector.broadcast %c2_i32_72 : i32 to vector<1x128xi32>
    %152 = arith.cmpi sge, %0, %151 : vector<1x128xi32>
    %cst_73 = arith.constant 0.000000e+00 : f32
    %153 = vector.shape_cast %152 : vector<1x128xi1> to vector<1x128xi1>
    %154 = vector.broadcast %153 : vector<1x128xi1> to vector<16x128xi1>
    %155 = vector.broadcast %cst_73 : f32 to vector<16x128xf32>
    %156 = arith.select %154, %150, %155 : vector<16x128xi1>, vector<16x128xf32>
    %157 = vector.extract_strided_slice %148 {offsets = [0, 0], sizes = [16, 1], strides = [1, 1]} : vector<16x3xf32> to vector<16x1xf32>
    %158 = vector.broadcast %157 : vector<16x1xf32> to vector<16x128xf32>
    %159 = arith.mulf %158, %156 : vector<16x128xf32>
    %160 = arith.addf %149, %159 : vector<16x128xf32>
    %161 = vector.extract_strided_slice %148 {offsets = [0, 1], sizes = [16, 1], strides = [1, 1]} : vector<16x3xf32> to vector<16x1xf32>
    %162 = vector.broadcast %161 : vector<16x1xf32> to vector<16x128xf32>
    %163 = arith.mulf %162, %146 : vector<16x128xf32>
    %164 = arith.addf %160, %163 : vector<16x128xf32>
    %c126_i32 = arith.constant 126 : i32
    %165 = tpu.dynamic_rotate %146 by %c126_i32 dim 1 : vector<16x128xf32>, i32 -> vector<16x128xf32>
    %c126_i32_74 = arith.constant 126 : i32
    %166 = vector.broadcast %c126_i32_74 : i32 to vector<1x128xi32>
    %167 = arith.cmpi slt, %0, %166 : vector<1x128xi32>
    %cst_75 = arith.constant 0.000000e+00 : f32
    %168 = vector.shape_cast %167 : vector<1x128xi1> to vector<1x128xi1>
    %169 = vector.broadcast %168 : vector<1x128xi1> to vector<16x128xi1>
    %170 = vector.broadcast %cst_75 : f32 to vector<16x128xf32>
    %171 = arith.select %169, %165, %170 : vector<16x128xi1>, vector<16x128xf32>
    %172 = vector.extract_strided_slice %148 {offsets = [0, 2], sizes = [16, 1], strides = [1, 1]} : vector<16x3xf32> to vector<16x1xf32>
    %173 = vector.broadcast %172 : vector<16x1xf32> to vector<16x128xf32>
    %174 = arith.mulf %173, %171 : vector<16x128xf32>
    %175 = arith.addf %164, %174 : vector<16x128xf32>
    %c1_76 = arith.constant 1 : index
    %c0_77 = arith.constant 0 : index
    %c0_78 = arith.constant 0 : index
    %176 = vector.load %arg7[%c1_76, %c0_77, %c0_78] : memref<3x1x1xf32, #tpu.memory_space<vmem>>, vector<1x1x1xf32>
    %177 = vector.shape_cast %176 : vector<1x1x1xf32> to vector<1x1xf32>
    %cst_79 = arith.constant 0.000000e+00 : f32
    %178 = vector.broadcast %cst_79 : f32 to vector<16x128xf32>
    %179 = arith.cmpf oge, %175, %178 : vector<16x128xf32>
    %180 = vector.broadcast %177 : vector<1x1xf32> to vector<16x128xf32>
    %181 = arith.mulf %180, %175 : vector<16x128xf32>
    %182 = arith.select %179, %175, %181 : vector<16x128xi1>, vector<16x128xf32>
    %c1_80 = arith.constant 1 : index
    %c0_81 = arith.constant 0 : index
    %c0_82 = arith.constant 0 : index
    %183 = vector.load %arg8[%c1_80, %c0_81, %c0_82] : memref<3x16x1xf32, #tpu.memory_space<vmem>>, vector<1x16x1xf32>
    %184 = vector.shape_cast %183 : vector<1x16x1xf32> to vector<16x1xf32>
    %c1_83 = arith.constant 1 : index
    %c0_84 = arith.constant 0 : index
    %c0_85 = arith.constant 0 : index
    %185 = vector.load %arg9[%c1_83, %c0_84, %c0_85] : memref<3x16x1xf32, #tpu.memory_space<vmem>>, vector<1x16x1xf32>
    %186 = vector.shape_cast %185 : vector<1x16x1xf32> to vector<16x1xf32>
    %187 = vector.shape_cast %182 : vector<16x128xf32> to vector<1x16x128xf32>
    %cst_86 = arith.constant dense<0.000000e+00> : vector<1xf32>
    %188 = vector.multi_reduction <add>, %187, %cst_86 [1, 2] : vector<1x16x128xf32> to vector<1xf32>
    %189 = vector.shape_cast %188 : vector<1xf32> to vector<1x1x1xf32>
    %190 = vector.extract %189[0, 0, 0] : f32 from vector<1x1x1xf32>
    %cst_87 = arith.constant 4.8828125E-4 : f32
    %191 = arith.mulf %190, %cst_87 : f32
    %192 = arith.mulf %182, %182 : vector<16x128xf32>
    %193 = vector.shape_cast %192 : vector<16x128xf32> to vector<1x16x128xf32>
    %cst_88 = arith.constant dense<0.000000e+00> : vector<1xf32>
    %194 = vector.multi_reduction <add>, %193, %cst_88 [1, 2] : vector<1x16x128xf32> to vector<1xf32>
    %195 = vector.shape_cast %194 : vector<1xf32> to vector<1x1x1xf32>
    %196 = vector.extract %195[0, 0, 0] : f32 from vector<1x1x1xf32>
    %cst_89 = arith.constant 4.8828125E-4 : f32
    %197 = arith.mulf %196, %cst_89 : f32
    %198 = arith.mulf %191, %191 : f32
    %199 = arith.subf %197, %198 : f32
    %cst_90 = arith.constant 0.000000e+00 : f32
    %200 = arith.maximumf %199, %cst_90 : f32
    %cst_91 = arith.constant 9.99999993E-9 : f32
    %201 = arith.addf %200, %cst_91 : f32
    %202 = math.rsqrt %201 : f32
    %203 = vector.broadcast %202 : f32 to vector<16x1xf32>
    %204 = arith.mulf %184, %203 : vector<16x1xf32>
    %205 = vector.broadcast %191 : f32 to vector<16x128xf32>
    %206 = arith.subf %182, %205 : vector<16x128xf32>
    %207 = vector.broadcast %204 : vector<16x1xf32> to vector<16x128xf32>
    %208 = arith.mulf %207, %206 : vector<16x128xf32>
    %209 = vector.broadcast %186 : vector<16x1xf32> to vector<16x128xf32>
    %210 = arith.addf %208, %209 : vector<16x128xf32>
    %c1_92 = arith.constant 1 : index
    %c0_93 = arith.constant 0 : index
    %c0_94 = arith.constant 0 : index
    %211 = vector.load %arg10[%c1_92, %c0_93, %c0_94] : memref<3x8x16xf32, #tpu.memory_space<vmem>>, vector<1x8x16xf32>
    %212 = vector.shape_cast %211 : vector<1x8x16xf32> to vector<8x16xf32>
    %cst_95 = arith.constant dense<0.000000e+00> : vector<8x128xf32>
    %213 = tpu.matmul %212, %210, %cst_95 {dimension_numbers = #tpu.dot_dimension_numbers<[1], [0], [0], [1], [0, 0, 1, 1], [], []>} : vector<8x16xf32>, vector<16x128xf32>, vector<8x128xf32> -> vector<8x128xf32>
    %214 = arith.addf %108, %213 : vector<8x128xf32>
    %c2 = arith.constant 2 : index
    %c0_96 = arith.constant 0 : index
    %c0_97 = arith.constant 0 : index
    %215 = vector.load %arg2[%c2, %c0_96, %c0_97] : memref<3x16x8xf32, #tpu.memory_space<vmem>>, vector<1x16x8xf32>
    %216 = vector.shape_cast %215 : vector<1x16x8xf32> to vector<16x8xf32>
    %cst_98 = arith.constant dense<0.000000e+00> : vector<16x128xf32>
    %217 = tpu.matmul %216, %214, %cst_98 {dimension_numbers = #tpu.dot_dimension_numbers<[1], [0], [0], [1], [0, 0, 1, 1], [], []>} : vector<16x8xf32>, vector<8x128xf32>, vector<16x128xf32> -> vector<16x128xf32>
    %c2_99 = arith.constant 2 : index
    %c0_100 = arith.constant 0 : index
    %c0_101 = arith.constant 0 : index
    %218 = vector.load %arg3[%c2_99, %c0_100, %c0_101] : memref<3x1x1xf32, #tpu.memory_space<vmem>>, vector<1x1x1xf32>
    %219 = vector.shape_cast %218 : vector<1x1x1xf32> to vector<1x1xf32>
    %cst_102 = arith.constant 0.000000e+00 : f32
    %220 = vector.broadcast %cst_102 : f32 to vector<16x128xf32>
    %221 = arith.cmpf oge, %217, %220 : vector<16x128xf32>
    %222 = vector.broadcast %219 : vector<1x1xf32> to vector<16x128xf32>
    %223 = arith.mulf %222, %217 : vector<16x128xf32>
    %224 = arith.select %221, %217, %223 : vector<16x128xi1>, vector<16x128xf32>
    %c2_103 = arith.constant 2 : index
    %c0_104 = arith.constant 0 : index
    %c0_105 = arith.constant 0 : index
    %225 = vector.load %arg4[%c2_103, %c0_104, %c0_105] : memref<3x16x1xf32, #tpu.memory_space<vmem>>, vector<1x16x1xf32>
    %226 = vector.shape_cast %225 : vector<1x16x1xf32> to vector<16x1xf32>
    %c2_106 = arith.constant 2 : index
    %c0_107 = arith.constant 0 : index
    %c0_108 = arith.constant 0 : index
    %227 = vector.load %arg5[%c2_106, %c0_107, %c0_108] : memref<3x16x1xf32, #tpu.memory_space<vmem>>, vector<1x16x1xf32>
    %228 = vector.shape_cast %227 : vector<1x16x1xf32> to vector<16x1xf32>
    %229 = vector.shape_cast %224 : vector<16x128xf32> to vector<1x16x128xf32>
    %cst_109 = arith.constant dense<0.000000e+00> : vector<1xf32>
    %230 = vector.multi_reduction <add>, %229, %cst_109 [1, 2] : vector<1x16x128xf32> to vector<1xf32>
    %231 = vector.shape_cast %230 : vector<1xf32> to vector<1x1x1xf32>
    %232 = vector.extract %231[0, 0, 0] : f32 from vector<1x1x1xf32>
    %cst_110 = arith.constant 4.8828125E-4 : f32
    %233 = arith.mulf %232, %cst_110 : f32
    %234 = arith.mulf %224, %224 : vector<16x128xf32>
    %235 = vector.shape_cast %234 : vector<16x128xf32> to vector<1x16x128xf32>
    %cst_111 = arith.constant dense<0.000000e+00> : vector<1xf32>
    %236 = vector.multi_reduction <add>, %235, %cst_111 [1, 2] : vector<1x16x128xf32> to vector<1xf32>
    %237 = vector.shape_cast %236 : vector<1xf32> to vector<1x1x1xf32>
    %238 = vector.extract %237[0, 0, 0] : f32 from vector<1x1x1xf32>
    %cst_112 = arith.constant 4.8828125E-4 : f32
    %239 = arith.mulf %238, %cst_112 : f32
    %240 = arith.mulf %233, %233 : f32
    %241 = arith.subf %239, %240 : f32
    %cst_113 = arith.constant 0.000000e+00 : f32
    %242 = arith.maximumf %241, %cst_113 : f32
    %cst_114 = arith.constant 9.99999993E-9 : f32
    %243 = arith.addf %242, %cst_114 : f32
    %244 = math.rsqrt %243 : f32
    %245 = vector.broadcast %244 : f32 to vector<16x1xf32>
    %246 = arith.mulf %226, %245 : vector<16x1xf32>
    %247 = vector.broadcast %233 : f32 to vector<16x128xf32>
    %248 = arith.subf %224, %247 : vector<16x128xf32>
    %249 = vector.broadcast %246 : vector<16x1xf32> to vector<16x128xf32>
    %250 = arith.mulf %249, %248 : vector<16x128xf32>
    %251 = vector.broadcast %228 : vector<16x1xf32> to vector<16x128xf32>
    %252 = arith.addf %250, %251 : vector<16x128xf32>
    %c2_115 = arith.constant 2 : index
    %c0_116 = arith.constant 0 : index
    %c0_117 = arith.constant 0 : index
    %253 = vector.load %arg6[%c2_115, %c0_116, %c0_117] : memref<3x16x3xf32, #tpu.memory_space<vmem>>, vector<1x16x3xf32>
    %254 = vector.shape_cast %253 : vector<1x16x3xf32> to vector<16x3xf32>
    %cst_118 = arith.constant 0.000000e+00 : f32
    %255 = vector.broadcast %cst_118 : f32 to vector<16x128xf32>
    %c4_i32 = arith.constant 4 : i32
    %256 = tpu.dynamic_rotate %252 by %c4_i32 dim 1 : vector<16x128xf32>, i32 -> vector<16x128xf32>
    %c4_i32_119 = arith.constant 4 : i32
    %257 = vector.broadcast %c4_i32_119 : i32 to vector<1x128xi32>
    %258 = arith.cmpi sge, %0, %257 : vector<1x128xi32>
    %cst_120 = arith.constant 0.000000e+00 : f32
    %259 = vector.shape_cast %258 : vector<1x128xi1> to vector<1x128xi1>
    %260 = vector.broadcast %259 : vector<1x128xi1> to vector<16x128xi1>
    %261 = vector.broadcast %cst_120 : f32 to vector<16x128xf32>
    %262 = arith.select %260, %256, %261 : vector<16x128xi1>, vector<16x128xf32>
    %263 = vector.extract_strided_slice %254 {offsets = [0, 0], sizes = [16, 1], strides = [1, 1]} : vector<16x3xf32> to vector<16x1xf32>
    %264 = vector.broadcast %263 : vector<16x1xf32> to vector<16x128xf32>
    %265 = arith.mulf %264, %262 : vector<16x128xf32>
    %266 = arith.addf %255, %265 : vector<16x128xf32>
    %267 = vector.extract_strided_slice %254 {offsets = [0, 1], sizes = [16, 1], strides = [1, 1]} : vector<16x3xf32> to vector<16x1xf32>
    %268 = vector.broadcast %267 : vector<16x1xf32> to vector<16x128xf32>
    %269 = arith.mulf %268, %252 : vector<16x128xf32>
    %270 = arith.addf %266, %269 : vector<16x128xf32>
    %c124_i32 = arith.constant 124 : i32
    %271 = tpu.dynamic_rotate %252 by %c124_i32 dim 1 : vector<16x128xf32>, i32 -> vector<16x128xf32>
    %c124_i32_121 = arith.constant 124 : i32
    %272 = vector.broadcast %c124_i32_121 : i32 to vector<1x128xi32>
    %273 = arith.cmpi slt, %0, %272 : vector<1x128xi32>
    %cst_122 = arith.constant 0.000000e+00 : f32
    %274 = vector.shape_cast %273 : vector<1x128xi1> to vector<1x128xi1>
    %275 = vector.broadcast %274 : vector<1x128xi1> to vector<16x128xi1>
    %276 = vector.broadcast %cst_122 : f32 to vector<16x128xf32>
    %277 = arith.select %275, %271, %276 : vector<16x128xi1>, vector<16x128xf32>
    %278 = vector.extract_strided_slice %254 {offsets = [0, 2], sizes = [16, 1], strides = [1, 1]} : vector<16x3xf32> to vector<16x1xf32>
    %279 = vector.broadcast %278 : vector<16x1xf32> to vector<16x128xf32>
    %280 = arith.mulf %279, %277 : vector<16x128xf32>
    %281 = arith.addf %270, %280 : vector<16x128xf32>
    %c2_123 = arith.constant 2 : index
    %c0_124 = arith.constant 0 : index
    %c0_125 = arith.constant 0 : index
    %282 = vector.load %arg7[%c2_123, %c0_124, %c0_125] : memref<3x1x1xf32, #tpu.memory_space<vmem>>, vector<1x1x1xf32>
    %283 = vector.shape_cast %282 : vector<1x1x1xf32> to vector<1x1xf32>
    %cst_126 = arith.constant 0.000000e+00 : f32
    %284 = vector.broadcast %cst_126 : f32 to vector<16x128xf32>
    %285 = arith.cmpf oge, %281, %284 : vector<16x128xf32>
    %286 = vector.broadcast %283 : vector<1x1xf32> to vector<16x128xf32>
    %287 = arith.mulf %286, %281 : vector<16x128xf32>
    %288 = arith.select %285, %281, %287 : vector<16x128xi1>, vector<16x128xf32>
    %c2_127 = arith.constant 2 : index
    %c0_128 = arith.constant 0 : index
    %c0_129 = arith.constant 0 : index
    %289 = vector.load %arg8[%c2_127, %c0_128, %c0_129] : memref<3x16x1xf32, #tpu.memory_space<vmem>>, vector<1x16x1xf32>
    %290 = vector.shape_cast %289 : vector<1x16x1xf32> to vector<16x1xf32>
    %c2_130 = arith.constant 2 : index
    %c0_131 = arith.constant 0 : index
    %c0_132 = arith.constant 0 : index
    %291 = vector.load %arg9[%c2_130, %c0_131, %c0_132] : memref<3x16x1xf32, #tpu.memory_space<vmem>>, vector<1x16x1xf32>
    %292 = vector.shape_cast %291 : vector<1x16x1xf32> to vector<16x1xf32>
    %293 = vector.shape_cast %288 : vector<16x128xf32> to vector<1x16x128xf32>
    %cst_133 = arith.constant dense<0.000000e+00> : vector<1xf32>
    %294 = vector.multi_reduction <add>, %293, %cst_133 [1, 2] : vector<1x16x128xf32> to vector<1xf32>
    %295 = vector.shape_cast %294 : vector<1xf32> to vector<1x1x1xf32>
    %296 = vector.extract %295[0, 0, 0] : f32 from vector<1x1x1xf32>
    %cst_134 = arith.constant 4.8828125E-4 : f32
    %297 = arith.mulf %296, %cst_134 : f32
    %298 = arith.mulf %288, %288 : vector<16x128xf32>
    %299 = vector.shape_cast %298 : vector<16x128xf32> to vector<1x16x128xf32>
    %cst_135 = arith.constant dense<0.000000e+00> : vector<1xf32>
    %300 = vector.multi_reduction <add>, %299, %cst_135 [1, 2] : vector<1x16x128xf32> to vector<1xf32>
    %301 = vector.shape_cast %300 : vector<1xf32> to vector<1x1x1xf32>
    %302 = vector.extract %301[0, 0, 0] : f32 from vector<1x1x1xf32>
    %cst_136 = arith.constant 4.8828125E-4 : f32
    %303 = arith.mulf %302, %cst_136 : f32
    %304 = arith.mulf %297, %297 : f32
    %305 = arith.subf %303, %304 : f32
    %cst_137 = arith.constant 0.000000e+00 : f32
    %306 = arith.maximumf %305, %cst_137 : f32
    %cst_138 = arith.constant 9.99999993E-9 : f32
    %307 = arith.addf %306, %cst_138 : f32
    %308 = math.rsqrt %307 : f32
    %309 = vector.broadcast %308 : f32 to vector<16x1xf32>
    %310 = arith.mulf %290, %309 : vector<16x1xf32>
    %311 = vector.broadcast %297 : f32 to vector<16x128xf32>
    %312 = arith.subf %288, %311 : vector<16x128xf32>
    %313 = vector.broadcast %310 : vector<16x1xf32> to vector<16x128xf32>
    %314 = arith.mulf %313, %312 : vector<16x128xf32>
    %315 = vector.broadcast %292 : vector<16x1xf32> to vector<16x128xf32>
    %316 = arith.addf %314, %315 : vector<16x128xf32>
    %c2_139 = arith.constant 2 : index
    %c0_140 = arith.constant 0 : index
    %c0_141 = arith.constant 0 : index
    %317 = vector.load %arg10[%c2_139, %c0_140, %c0_141] : memref<3x8x16xf32, #tpu.memory_space<vmem>>, vector<1x8x16xf32>
    %318 = vector.shape_cast %317 : vector<1x8x16xf32> to vector<8x16xf32>
    %cst_142 = arith.constant dense<0.000000e+00> : vector<8x128xf32>
    %319 = tpu.matmul %318, %316, %cst_142 {dimension_numbers = #tpu.dot_dimension_numbers<[1], [0], [0], [1], [0, 0, 1, 1], [], []>} : vector<8x16xf32>, vector<16x128xf32>, vector<8x128xf32> -> vector<8x128xf32>
    %320 = arith.addf %214, %319 : vector<8x128xf32>
    %c0_143 = arith.constant 0 : index
    %c0_144 = arith.constant 0 : index
    %c0_145 = arith.constant 0 : index
    %321 = vector.load %arg11[%c0_143, %c0_144, %c0_145] : memref<1x8x128xf32, #tpu.memory_space<vmem>>, vector<1x8x128xf32>
    %322 = vector.shape_cast %321 : vector<1x8x128xf32> to vector<8x128xf32>
    %323 = vector.shape_cast %320 : vector<8x128xf32> to vector<1x8x128xf32>
    tpu.vector_store %arg11[%c0_143, %c0_144, %c0_145], %323 {strides = array<i32>} : memref<1x8x128xf32, #tpu.memory_space<vmem>>, vector<1x8x128xf32>,
    return
  }
  func.func @transform_0(%arg0: i32) -> (i32, i32, i32) {
    %c0_i32 = arith.constant 0 : i32
    %c0_i32_0 = arith.constant 0 : i32
    %c0_i32_1 = arith.constant 0 : i32
    return %arg0, %c0_i32, %c0_i32_0 : i32, i32, i32
  }
  func.func @transform_1(%arg0: i32) -> (i32, i32, i32) {
    %c0_i32 = arith.constant 0 : i32
    %c0_i32_0 = arith.constant 0 : i32
    %c0_i32_1 = arith.constant 0 : i32
    %c0_i32_2 = arith.constant 0 : i32
    return %c0_i32, %c0_i32_0, %c0_i32_1 : i32, i32, i32
  }
  func.func @transform_2(%arg0: i32) -> (i32, i32, i32) {
    %c0_i32 = arith.constant 0 : i32
    %c0_i32_0 = arith.constant 0 : i32
    %c0_i32_1 = arith.constant 0 : i32
    %c0_i32_2 = arith.constant 0 : i32
    return %c0_i32, %c0_i32_0, %c0_i32_1 : i32, i32, i32
  }
  func.func @transform_3(%arg0: i32) -> (i32, i32, i32) {
    %c0_i32 = arith.constant 0 : i32
    %c0_i32_0 = arith.constant 0 : i32
    %c0_i32_1 = arith.constant 0 : i32
    %c0_i32_2 = arith.constant 0 : i32
    return %c0_i32, %c0_i32_0, %c0_i32_1 : i32, i32, i32
  }
  func.func @transform_4(%arg0: i32) -> (i32, i32, i32) {
    %c0_i32 = arith.constant 0 : i32
    %c0_i32_0 = arith.constant 0 : i32
    %c0_i32_1 = arith.constant 0 : i32
    %c0_i32_2 = arith.constant 0 : i32
    return %c0_i32, %c0_i32_0, %c0_i32_1 : i32, i32, i32
  }
  func.func @transform_5(%arg0: i32) -> (i32, i32, i32) {
    %c0_i32 = arith.constant 0 : i32
    %c0_i32_0 = arith.constant 0 : i32
    %c0_i32_1 = arith.constant 0 : i32
    %c0_i32_2 = arith.constant 0 : i32
    return %c0_i32, %c0_i32_0, %c0_i32_1 : i32, i32, i32
  }
  func.func @transform_6(%arg0: i32) -> (i32, i32, i32) {
    %c0_i32 = arith.constant 0 : i32
    %c0_i32_0 = arith.constant 0 : i32
    %c0_i32_1 = arith.constant 0 : i32
    %c0_i32_2 = arith.constant 0 : i32
    return %c0_i32, %c0_i32_0, %c0_i32_1 : i32, i32, i32
  }
  func.func @transform_7(%arg0: i32) -> (i32, i32, i32) {
    %c0_i32 = arith.constant 0 : i32
    %c0_i32_0 = arith.constant 0 : i32
    %c0_i32_1 = arith.constant 0 : i32
    %c0_i32_2 = arith.constant 0 : i32
    return %c0_i32, %c0_i32_0, %c0_i32_1 : i32, i32, i32
  }
  func.func @transform_8(%arg0: i32) -> (i32, i32, i32) {
    %c0_i32 = arith.constant 0 : i32
    %c0_i32_0 = arith.constant 0 : i32
    %c0_i32_1 = arith.constant 0 : i32
    %c0_i32_2 = arith.constant 0 : i32
    return %c0_i32, %c0_i32_0, %c0_i32_1 : i32, i32, i32
  }
  func.func @transform_9(%arg0: i32) -> (i32, i32, i32) {
    %c0_i32 = arith.constant 0 : i32
    %c0_i32_0 = arith.constant 0 : i32
    %c0_i32_1 = arith.constant 0 : i32
    %c0_i32_2 = arith.constant 0 : i32
    return %c0_i32, %c0_i32_0, %c0_i32_1 : i32, i32, i32
  }
  func.func @transform_10(%arg0: i32) -> (i32, i32, i32) {
    %c0_i32 = arith.constant 0 : i32
    %c0_i32_0 = arith.constant 0 : i32
    %c0_i32_1 = arith.constant 0 : i32
    return %arg0, %c0_i32, %c0_i32_0 : i32, i32, i32
  }
}

</mosaic_0001>

<llo_original>
// kernel: tcn_block.1
$region0: #{tcn_block.1}
  #allocation0 [shape = 'u32[]', space=smem, size = 0x4, offset = 0x4, fixed_abs, tag = 'smem constant byte address 0x4 - core index']
  #allocation1 [shape = 'u32[144,128]{1,0:T(1,128)}', space=vmem, size = 0x12000, scoped, tag = 'internal scratch']
  %s0 = inlined_call_operand.vmem [shape: f32[2,8,128], index: 0, kind: input, shape index: {}]
  %s1 = inlined_call_operand.vmem [shape: f32[3,16,8], index: 1, kind: input, shape index: {}]
  %s2 = inlined_call_operand.vmem [shape: f32[3,1,1], index: 2, kind: input, shape index: {}]
  %s3 = inlined_call_operand.vmem [shape: f32[3,16,1], index: 3, kind: input, shape index: {}]
  %s4 = inlined_call_operand.vmem [shape: f32[3,16,1], index: 4, kind: input, shape index: {}]
  %s5 = inlined_call_operand.vmem [shape: f32[3,16,3], index: 5, kind: input, shape index: {}]
  %s6 = inlined_call_operand.vmem [shape: f32[3,1,1], index: 6, kind: input, shape index: {}]
  %s7 = inlined_call_operand.vmem [shape: f32[3,16,1], index: 7, kind: input, shape index: {}]
  %s8 = inlined_call_operand.vmem [shape: f32[3,16,1], index: 8, kind: input, shape index: {}]
  %s9 = inlined_call_operand.vmem [shape: f32[3,8,16], index: 9, kind: input, shape index: {}]
  %s10 = inlined_call_operand.hbm [shape: f32[2,8,128], index: 10, kind: output, shape index: {}]
  %s11 = sld [smem:[#allocation0]]
  $region73: #{tcn_block.1} parent=0
    _
  %s13 = ssub.s32 1, %s11
  %s14 = scalar_select 0, %s13, %s11
  $region1: #{tcn_block.1} parent=0
    #allocation2 [shape = 'u8[8192]{0}', space=vmem, size = 0x2000, scoped, tag = 'output window, operand 0']
    #allocation3 [shape = 's32[2]{0}', space=sflag, size = 0x8, scoped, tag = 'scoped memory for tcn_block.1']
    %15 = vsyncpa [#allocation3], 0
    %s16 = scalar_lea.sflag [#allocation3], 1
    %17 = vsyncpa %s16, 0
    loop: start=0, step=1, limit=4
    $region2: #{tcn_block.1} parent=1 // loop_pre_header
      _
    $region3: #{tcn_block.1} parent=1 // loop_header
      %s19 = sphi 0, %s23
      %p20 = scmp.ge.s32.totalorder %s19, 4
      %s29 = sphi 0, %s31
      %s32 = sphi 0, %s29
      %s33 = sphi 0, %s32
      %s49 = sphi 0, %s33
      %s53 = sphi 0, %s53
      %s55 = sphi 0, %s53
      %s56 = sphi 0, %s55
      %s70 = sphi 0, %s56
      %s74 = sphi 0, %s74
      %s76 = sphi 0, %s74
      %s77 = sphi 0, %s76
      %s91 = sphi 0, %s77
      %s95 = sphi 0, %s95
      %s97 = sphi 0, %s95
      %s98 = sphi 0, %s97
      %s112 = sphi 0, %s98
      %s116 = sphi 0, %s116
      %s118 = sphi 0, %s116
      %s119 = sphi 0, %s118
      %s133 = sphi 0, %s119
      %s137 = sphi 0, %s137
      %s139 = sphi 0, %s137
      %s140 = sphi 0, %s139
      %s154 = sphi 0, %s140
      %s158 = sphi 0, %s158
      %s160 = sphi 0, %s158
      %s161 = sphi 0, %s160
      %s175 = sphi 0, %s161
      %s179 = sphi 0, %s179
      %s181 = sphi 0, %s179
      %s182 = sphi 0, %s181
      %s196 = sphi 0, %s182
      %s200 = sphi 0, %s200
      %s202 = sphi 0, %s200
      %s203 = sphi 0, %s202
      %s217 = sphi 0, %s203
      %s221 = sphi 0, %s221
      %s223 = sphi 0, %s221
      %s224 = sphi 0, %s223
      %s238 = sphi 0, %s224
      %s244 = sphi 0, %s246
      %s247 = sphi 0, %s244
      %s248 = sphi 0, %s247
      %s264 = sphi 0, %s248
    $region4: #{tcn_block.1} parent=1 // loop_header_branch
      %22 = sbr.rel (%p20) target = $region8
    $region5: #{tcn_block.1} parent=1 // loop_body
      %s24 = ssub.s32 %s19, 1
      %s25 = ssub.s32 %s19, 2
      %s26 = sadd.s32 %s19, 1
      %s27 = ssub.s32 %s19, %s26
      %p28 = scmp.eq.s32.totalorder %s27, 0
      %s30 = sadd.s32 %s29, 1
      %s31 = scalar_select %p28, %s29, %s30
      %p34 = pneg %p28
      %p35 = scmp.eq.s32.totalorder %s19, 1
      %p36 = por %p34, %p35
      %p37 = scmp.ne.s32.totalorder %s29, %s32
      %p38 = scmp.eq.s32.totalorder %s19, 0
      %p39 = por %p37, %p38
      %p40 = scmp.ne.s32.totalorder %s29, %s32
      %p41 = scmp.eq.s32.totalorder %s24, 1
      %p42 = por %p40, %p41
      %p43 = scmp.ne.s32.totalorder %s32, %s33
      %p44 = scmp.eq.s32.totalorder %s24, 0
      %p45 = por %p43, %p44
      %p46 = scmp.ne.s32.totalorder %s32, %s33
      %p47 = scmp.eq.s32.totalorder %s25, 1
      %p48 = por %p46, %p47
      %p50 = scmp.ne.s32.totalorder %s33, %s49
      %p51 = scmp.eq.s32.totalorder %s25, 0
      %p52 = por %p50, %p51
      %s54 = sadd.s32 %s53, 1
      %p57 = scmp.eq.s32.totalorder %s19, 1
      %p58 = scmp.ne.s32.totalorder %s53, %s55
      %p59 = scmp.eq.s32.totalorder %s19, 0
      %p60 = por %p58, %p59
      %p61 = scmp.ne.s32.totalorder %s53, %s55
      %p62 = scmp.eq.s32.totalorder %s24, 1
      %p63 = por %p61, %p62
      %p64 = scmp.ne.s32.totalorder %s55, %s56
      %p65 = scmp.eq.s32.totalorder %s24, 0
      %p66 = por %p64, %p65
      %p67 = scmp.ne.s32.totalorder %s55, %s56
      %p68 = scmp.eq.s32.totalorder %s25, 1
      %p69 = por %p67, %p68
      %p71 = scmp.ne.s32.totalorder %s56, %s70
      %p72 = scmp.eq.s32.totalorder %s25, 0
      %p73 = por %p71, %p72
      %s75 = sadd.s32 %s74, 1
      %p78 = scmp.eq.s32.totalorder %s19, 1
      %p79 = scmp.ne.s32.totalorder %s74, %s76
      %p80 = scmp.eq.s32.totalorder %s19, 0
      %p81 = por %p79, %p80
      %p82 = scmp.ne.s32.totalorder %s74, %s76
      %p83 = scmp.eq.s32.totalorder %s24, 1
      %p84 = por %p82, %p83
      %p85 = scmp.ne.s32.totalorder %s76, %s77
      %p86 = scmp.eq.s32.totalorder %s24, 0
      %p87 = por %p85, %p86
      %p88 = scmp.ne.s32.totalorder %s76, %s77
      %p89 = scmp.eq.s32.totalorder %s25, 1
      %p90 = por %p88, %p89
      %p92 = scmp.ne.s32.totalorder %s77, %s91
      %p93 = scmp.eq.s32.totalorder %s25, 0
      %p94 = por %p92, %p93
      %s96 = sadd.s32 %s95, 1
      %p99 = scmp.eq.s32.totalorder %s19, 1
      %p100 = scmp.ne.s32.totalorder %s95, %s97
      %p101 = scmp.eq.s32.totalorder %s19, 0
      %p102 = por %p100, %p101
      %p103 = scmp.ne.s32.totalorder %s95, %s97
      %p104 = scmp.eq.s32.totalorder %s24, 1
      %p105 = por %p103, %p104
      %p106 = scmp.ne.s32.totalorder %s97, %s98
      %p107 = scmp.eq.s32.totalorder %s24, 0
      %p108 = por %p106, %p107
      %p109 = scmp.ne.s32.totalorder %s97, %s98
      %p110 = scmp.eq.s32.totalorder %s25, 1
      %p111 = por %p109, %p110
      %p113 = scmp.ne.s32.totalorder %s98, %s112
      %p114 = scmp.eq.s32.totalorder %s25, 0
      %p115 = por %p113, %p114
      %s117 = sadd.s32 %s116, 1
      %p120 = scmp.eq.s32.totalorder %s19, 1
      %p121 = scmp.ne.s32.totalorder %s116, %s118
      %p122 = scmp.eq.s32.totalorder %s19, 0
      %p123 = por %p121, %p122
      %p124 = scmp.ne.s32.totalorder %s116, %s118
      %p125 = scmp.eq.s32.totalorder %s24, 1
      %p126 = por %p124, %p125
      %p127 = scmp.ne.s32.totalorder %s118, %s119
      %p128 = scmp.eq.s32.totalorder %s24, 0
      %p129 = por %p127, %p128
      %p130 = scmp.ne.s32.totalorder %s118, %s119
      %p131 = scmp.eq.s32.totalorder %s25, 1
      %p132 = por %p130, %p131
      %p134 = scmp.ne.s32.totalorder %s119, %s133
      %p135 = scmp.eq.s32.totalorder %s25, 0
      %p136 = por %p134, %p135
      %s138 = sadd.s32 %s137, 1
      %p141 = scmp.eq.s32.totalorder %s19, 1
      %p142 = scmp.ne.s32.totalorder %s137, %s139
      %p143 = scmp.eq.s32.totalorder %s19, 0
      %p144 = por %p142, %p143
      %p145 = scmp.ne.s32.totalorder %s137, %s139
      %p146 = scmp.eq.s32.totalorder %s24, 1
      %p147 = por %p145, %p146
      %p148 = scmp.ne.s32.totalorder %s139, %s140
      %p149 = scmp.eq.s32.totalorder %s24, 0
      %p150 = por %p148, %p149
      %p151 = scmp.ne.s32.totalorder %s139, %s140
      %p152 = scmp.eq.s32.totalorder %s25, 1
      %p153 = por %p151, %p152
      %p155 = scmp.ne.s32.totalorder %s140, %s154
      %p156 = scmp.eq.s32.totalorder %s25, 0
      %p157 = por %p155, %p156
      %s159 = sadd.s32 %s158, 1
      %p162 = scmp.eq.s32.totalorder %s19, 1
      %p163 = scmp.ne.s32.totalorder %s158, %s160
      %p164 = scmp.eq.s32.totalorder %s19, 0
      %p165 = por %p163, %p164
      %p166 = scmp.ne.s32.totalorder %s158, %s160
      %p167 = scmp.eq.s32.totalorder %s24, 1
      %p168 = por %p166, %p167
      %p169 = scmp.ne.s32.totalorder %s160, %s161
      %p170 = scmp.eq.s32.totalorder %s24, 0
      %p171 = por %p169, %p170
      %p172 = scmp.ne.s32.totalorder %s160, %s161
      %p173 = scmp.eq.s32.totalorder %s25, 1
      %p174 = por %p172, %p173
      %p176 = scmp.ne.s32.totalorder %s161, %s175
      %p177 = scmp.eq.s32.totalorder %s25, 0
      %p178 = por %p176, %p177
      %s180 = sadd.s32 %s179, 1
      %p183 = scmp.eq.s32.totalorder %s19, 1
      %p184 = scmp.ne.s32.totalorder %s179, %s181
      %p185 = scmp.eq.s32.totalorder %s19, 0
      %p186 = por %p184, %p185
      %p187 = scmp.ne.s32.totalorder %s179, %s181
      %p188 = scmp.eq.s32.totalorder %s24, 1
      %p189 = por %p187, %p188
      %p190 = scmp.ne.s32.totalorder %s181, %s182
      %p191 = scmp.eq.s32.totalorder %s24, 0
      %p192 = por %p190, %p191
      %p193 = scmp.ne.s32.totalorder %s181, %s182
      %p194 = scmp.eq.s32.totalorder %s25, 1
      %p195 = por %p193, %p194
      %p197 = scmp.ne.s32.totalorder %s182, %s196
      %p198 = scmp.eq.s32.totalorder %s25, 0
      %p199 = por %p197, %p198
      %s201 = sadd.s32 %s200, 1
      %p204 = scmp.eq.s32.totalorder %s19, 1
      %p205 = scmp.ne.s32.totalorder %s200, %s202
      %p206 = scmp.eq.s32.totalorder %s19, 0
      %p207 = por %p205, %p206
      %p208 = scmp.ne.s32.totalorder %s200, %s202
      %p209 = scmp.eq.s32.totalorder %s24, 1
      %p210 = por %p208, %p209
      %p211 = scmp.ne.s32.totalorder %s202, %s203
      %p212 = scmp.eq.s32.totalorder %s24, 0
      %p213 = por %p211, %p212
      %p214 = scmp.ne.s32.totalorder %s202, %s203
      %p215 = scmp.eq.s32.totalorder %s25, 1
      %p216 = por %p214, %p215
      %p218 = scmp.ne.s32.totalorder %s203, %s217
      %p219 = scmp.eq.s32.totalorder %s25, 0
      %p220 = por %p218, %p219
      %s222 = sadd.s32 %s221, 1
      %p225 = scmp.eq.s32.totalorder %s19, 1
      %p226 = scmp.ne.s32.totalorder %s221, %s223
      %p227 = scmp.eq.s32.totalorder %s19, 0
      %p228 = por %p226, %p227
      %p229 = scmp.ne.s32.totalorder %s221, %s223
      %p230 = scmp.eq.s32.totalorder %s24, 1
      %p231 = por %p229, %p230
      %p232 = scmp.ne.s32.totalorder %s223, %s224
      %p233 = scmp.eq.s32.totalorder %s24, 0
      %p234 = por %p232, %p233
      %p235 = scmp.ne.s32.totalorder %s223, %s224
      %p236 = scmp.eq.s32.totalorder %s25, 1
      %p237 = por %p235, %p236
      %p239 = scmp.ne.s32.totalorder %s224, %s238
      %p240 = scmp.eq.s32.totalorder %s25, 0
      %p241 = por %p239, %p240
      %s242 = ssub.s32 %s19, %s26
      %p243 = scmp.eq.s32.totalorder %s242, 0
      %s245 = sadd.s32 %s244, 1
      %s246 = scalar_select %p243, %s244, %s245
      %p249 = pneg %p243
      %p250 = scmp.eq.s32.totalorder %s19, 1
      %p251 = por %p249, %p250
      %p252 = scmp.ne.s32.totalorder %s244, %s247
      %p253 = scmp.eq.s32.totalorder %s19, 0
      %p254 = por %p252, %p253
      %p255 = scmp.ne.s32.totalorder %s244, %s247
      %p256 = scmp.eq.s32.totalorder %s24, 1
      %p257 = por %p255, %p256
      %p258 = scmp.ne.s32.totalorder %s247, %s248
      %p259 = scmp.eq.s32.totalorder %s24, 0
      %p260 = por %p258, %p259
      %p261 = scmp.ne.s32.totalorder %s247, %s248
      %p262 = scmp.eq.s32.totalorder %s25, 1
      %p263 = por %p261, %p262
      %p265 = scmp.ne.s32.totalorder %s248, %s264
      %p266 = scmp.eq.s32.totalorder %s25, 0
      %p267 = por %p265, %p266
      %p268 = scmp.le.s32.totalorder 1, %s19
      %p269 = scmp.lt.s32.totalorder %s19, 3
      %p270 = pnand %p268, %p269
      %p271 = pneg %p270
      // Predicated region
      $region9: #{tcn_block.1} parent=5 // pred_check
        _
      $region10: #{tcn_block.1} parent=5 // pred_check_branch
        %273 = sbr.rel (%p270) target = $region12
      $region11: #{tcn_block.1} parent=5 // pred_region
        %s274 = ssub.s32 %s19, 1
        // Predicated region
        $region13: #{tcn_block.1} parent=11 // pred_check
          %p275 = pneg %p66
        $region14: #{tcn_block.1} parent=11 // pred_check_branch
          %277 = sbr.rel (%p275) target = $region16
        $region15: #{tcn_block.1} parent=11 // pred_region
          _
        $region16: #{tcn_block.1} parent=11 // pred_fallthru
          _
        // Predicated region
        $region17: #{tcn_block.1} parent=11 // pred_check
          %p278 = pneg %p87
        $region18: #{tcn_block.1} parent=11 // pred_check_branch
          %280 = sbr.rel (%p278) target = $region20
        $region19: #{tcn_block.1} parent=11 // pred_region
          _
        $region20: #{tcn_block.1} parent=11 // pred_fallthru
          _
        // Predicated region
        $region21: #{tcn_block.1} parent=11 // pred_check
          %p281 = pneg %p108
        $region22: #{tcn_block.1} parent=11 // pred_check_branch
          %283 = sbr.rel (%p281) target = $region24
        $region23: #{tcn_block.1} parent=11 // pred_region
          _
        $region24: #{tcn_block.1} parent=11 // pred_fallthru
          _
        // Predicated region
        $region25: #{tcn_block.1} parent=11 // pred_check
          %p284 = pneg %p129
        $region26: #{tcn_block.1} parent=11 // pred_check_branch
          %286 = sbr.rel (%p284) target = $region28
        $region27: #{tcn_block.1} parent=11 // pred_region
          _
        $region28: #{tcn_block.1} parent=11 // pred_fallthru
          _
        // Predicated region
        $region29: #{tcn_block.1} parent=11 // pred_check
          %p287 = pneg %p150
        $region30: #{tcn_block.1} parent=11 // pred_check_branch
          %289 = sbr.rel (%p287) target = $region32
        $region31: #{tcn_block.1} parent=11 // pred_region
          _
        $region32: #{tcn_block.1} parent=11 // pred_fallthru
          _
        // Predicated region
        $region33: #{tcn_block.1} parent=11 // pred_check
          %p290 = pneg %p171
        $region34: #{tcn_block.1} parent=11 // pred_check_branch
          %292 = sbr.rel (%p290) target = $region36
        $region35: #{tcn_block.1} parent=11 // pred_region
          _
        $region36: #{tcn_block.1} parent=11 // pred_fallthru
          _
        // Predicated region
        $region37: #{tcn_block.1} parent=11 // pred_check
          %p293 = pneg %p192
        $region38: #{tcn_block.1} parent=11 // pred_check_branch
          %295 = sbr.rel (%p293) target = $region40
        $region39: #{tcn_block.1} parent=11 // pred_region
          _
        $region40: #{tcn_block.1} parent=11 // pred_fallthru
          _
        // Predicated region
        $region41: #{tcn_block.1} parent=11 // pred_check
          %p296 = pneg %p213
        $region42: #{tcn_block.1} parent=11 // pred_check_branch
          %298 = sbr.rel (%p296) target = $region44
        $region43: #{tcn_block.1} parent=11 // pred_region
          _
        $region44: #{tcn_block.1} parent=11 // pred_fallthru
          _
        // Predicated region
        $region45: #{tcn_block.1} parent=11 // pred_check
          %p299 = pneg %p234
        $region46: #{tcn_block.1} parent=11 // pred_check_branch
          %301 = sbr.rel (%p299) target = $region48
        $region47: #{tcn_block.1} parent=11 // pred_region
          _
        $region48: #{tcn_block.1} parent=11 // pred_fallthru
          _
      $region12: #{tcn_block.1} parent=5 // pred_fallthru
        _
      %p302 = scmp.lt.s32.totalorder %s19, 2
      // Predicated region
      $region49: #{tcn_block.1} parent=5 // pred_check
        %p303 = pneg %p302
      $region50: #{tcn_block.1} parent=5 // pred_check_branch
        %305 = sbr.rel (%p303) target = $region52
      $region51: #{tcn_block.1} parent=5 // pred_region
        // Predicated region
        $region53: #{tcn_block.1} parent=51 // pred_check
          %p306 = pneg %p39
        $region54: #{tcn_block.1} parent=51 // pred_check_branch
          %308 = sbr.rel (%p306) target = $region56
        $region55: #{tcn_block.1} parent=51 // pred_region
          %p309 = scmp.lt.s32.totalorder %s19, 1
          %s310 = scalar_select %p309, %s19, 1
          %s311 = smul.addr %s310, 8
          %s312 = scalar_lea.vmem %s0, %s311
        $region56: #{tcn_block.1} parent=51 // pred_fallthru
          _
      $region52: #{tcn_block.1} parent=5 // pred_fallthru
        _
      %p313 = scmp.le.s32.totalorder 1, %s19
      %p314 = scmp.lt.s32.totalorder %s19, 3
      %p315 = pnand %p313, %p314
      %p316 = pneg %p315
      // Predicated region
      $region57: #{tcn_block.1} parent=5 // pred_check
        _
      $region58: #{tcn_block.1} parent=5 // pred_check_branch
        %318 = sbr.rel (%p315) target = $region60
      $region59: #{tcn_block.1} parent=5 // pred_region
        %s319 = ssub.s32 %s19, 1
        %p320 = scmp.lt.s32.totalorder %s24, 1
        %s321 = scalar_select %p320, %s24, 1
        %s322 = smul.addr %s321, 8
        %s323 = scalar_lea.vmem %s0, %s322
        %p324 = pneg %p45
        %p325 = pneg %p42
        %p326 = pneg %p66
        %p327 = pneg %p63
        %p328 = pneg %p87
        %p329 = pneg %p84
        %p330 = pneg %p108
        %p331 = pneg %p105
        %p332 = pneg %p129
        %p333 = pneg %p126
        %p334 = pneg %p150
        %p335 = pneg %p147
        %p336 = pneg %p171
        %p337 = pneg %p168
        %p338 = pneg %p192
        %p339 = pneg %p189
        %p340 = pneg %p213
        %p341 = pneg %p210
        %p342 = pneg %p234
        %p343 = pneg %p231
        %p344 = pneg %p260
        %p345 = pneg %p257
        %s346 = sand.u32 %s247, 1
        %s347 = scalar_lea.sflag [#allocation3], %s346
        %s348 = sand.u32 %s247, 1
        %s349 = smul.addr %s348, 8
        %s350 = scalar_lea.vmem [#allocation2], %s349
        %p351 = scmp.lt.s32.totalorder %s24, 1
        %s352 = scalar_select %p351, %s24, 1
        %s353 = smul.addr %s352, 8
        %s354 = scalar_lea.vmem %s0, %s353
        %v355 = vlaneseq
        %v356 = vand.u32 %v355, 127
        %v357 = vld [vmem:[%s354] sm:$0xff]
        %v358 = vld [vmem:[%s1] sm:$0xff]
        %v359 = vld [vmem:[%s1 + $0x8] sm:$0xff]
        %vm360 = vcmask 64512
        %v362 = vsel %vm360, %v358, 0
        %v365 = vsel %vm360, %v359, 0
        %367 = vmatprep.subr.mxu0 0.0
        %368 = vmatpush1.msra.mxu0 0.0
        %369 = vmatprep.subr.mxu0 0.0
        %370 = vmatpush1.msra.mxu0 0.0
        %371 = vmatprep.subr.mxu0 0.0
        %372 = vmatpush1.msra.mxu0 0.0
        %373 = vmatprep.subr.mxu0 0.0
        %374 = vmatpush1.msra.mxu0 0.0
        %375 = vmatprep.subr.mxu0 0.0
        %376 = vmatpush1.msra.mxu0 0.0
        %377 = vmatprep.subr.mxu0 0.0
        %378 = vmatpush1.msra.mxu0 0.0
        %379 = vmatprep.subr.mxu0 0.0
        %380 = vmatpush1.msra.mxu0 0.0
        %381 = vmatprep.subr.mxu0 0.0
        %382 = vmatpush1.msra.mxu0 0.0
        %383 = vmatprep.subr.mxu0 0.0
        %384 = vmatpush1.msra.mxu0 0.0
        %385 = vmatprep.subr.mxu0 0.0
        %386 = vmatpush1.msra.mxu0 0.0
        %387 = vmatprep.subr.mxu0 0.0
        %388 = vmatpush1.msra.mxu0 0.0
        %389 = vmatprep.subr.mxu0 0.0
        %390 = vmatpush1.msra.mxu0 0.0
        %391 = vmatprep.subr.mxu0 0.0
        %392 = vmatpush1.msra.mxu0 0.0
        %393 = vmatprep.subr.mxu0 0.0
        %394 = vmatpush1.msra.mxu0 0.0
        %395 = vmatprep.subr.mxu0 0.0
        %396 = vmatpush1.msra.mxu0 0.0
        %397 = vmatprep.subr.mxu0 0.0
        %398 = vmatpush1.msra.mxu0 %v357
        %399 = vmatprep.subr.mxu0 0.0
        %400 = vmatpush2.msra.mxu0 0.0
        %401 = vmatprep.subr.mxu0 0.0
        %402 = vmatpush2.msra.mxu0 0.0
        %403 = vmatprep.subr.mxu0 0.0
        %404 = vmatpush2.msra.mxu0 0.0
        %405 = vmatprep.subr.mxu0 0.0
        %406 = vmatpush2.msra.mxu0 0.0
        %407 = vmatprep.subr.mxu0 0.0
        %408 = vmatpush2.msra.mxu0 0.0
        %409 = vmatprep.subr.mxu0 0.0
        %410 = vmatpush2.msra.mxu0 0.0
        %411 = vmatprep.subr.mxu0 0.0
        %412 = vmatpush2.msra.mxu0 0.0
        %413 = vmatprep.subr.mxu0 0.0
        %414 = vmatpush2.msra.mxu0 0.0
        %415 = vmatprep.subr.mxu0 0.0
        %416 = vmatpush2.msra.mxu0 0.0
        %417 = vmatprep.subr.mxu0 0.0
        %418 = vmatpush2.msra.mxu0 0.0
        %419 = vmatprep.subr.mxu0 0.0
        %420 = vmatpush2.msra.mxu0 0.0
        %421 = vmatprep.subr.mxu0 0.0
        %422 = vmatpush2.msra.mxu0 0.0
        %423 = vmatprep.subr.mxu0 0.0
        %424 = vmatpush2.msra.mxu0 0.0
        %425 = vmatprep.subr.mxu0 0.0
        %426 = vmatpush2.msra.mxu0 0.0
        %427 = vmatprep.subr.mxu0 0.0
        %428 = vmatpush2.msra.mxu0 0.0
        %429 = vmatprep.subr.mxu0 0.0
        %430 = vmatpush2.msra.mxu0 0.0
        %431 = vmatprep.mubr.f32.mxu0 0.0
        %432 = vmatmul.mubr.f32.gmra.mxu0 %v362
        %v433 = vpop.f32.mrf.mxu0
        %v434 = vadd.f32 0.0, %v433
        %v435 = vpop.f32.mrf.mxu0
        %436 = vmatprep.mubr.f32.mxu0 0.0
        %437 = vmatmul.mubr.f32.gmra.mxu0 %v365
        %v438 = vpop.f32.mrf.mxu0
        %v439 = vadd.f32 0.0, %v438
        %v440 = vpop.f32.mrf.mxu0
        %441 = vdwg.mxu0
        %v442 = vld [vmem:[%s2] sm:$0x1]
        %vm443 = vcmp.ge.f32.partialorder %v434, 0.0
        %vm444 = vcmp.ge.f32.partialorder %v439, 0.0
        %v446 = vlaneseq
        %v447 = vshrl.u32 %v446, 7
        %v448 = vsub.s32 0, %v447
        %v449 = vrot.slane %v442, %v448
        %450 = vset.pattern.permute.xlu0 0
        %451 = vperm.xlu0 %450, %v449
        %v452 = vpop.permute.xlu0 %451
        %v454 = vmul.f32 %v452, %v434
        %v455 = vmul.f32 %v452, %v439
        %v456 = vsel %vm443, %v434, %v454
        %v457 = vsel %vm444, %v439, %v455
        %v458 = vld [vmem:[%s3] sm:$0xff]
        %v459 = vld [vmem:[%s3 + $0x8] sm:$0xff]
        %v460 = vld [vmem:[%s4] sm:$0xff]
        %v461 = vld [vmem:[%s4 + $0x8] sm:$0xff]
        %v462 = vadd.f32 %v456, %v457
        %463 = vadd.xlane.f32.xlu0 %v462
        %v464 = vpop.xlane.xlu0 %463
        %v465 = vrot.slane %v464, 4
        %v466 = vadd.f32 %v464, %v465
        %v467 = vrot.slane %v466, 2
        %v468 = vadd.f32 %v466, %v467
        %v469 = vrot.slane %v468, 1
        %v470 = vadd.f32 %v468, %v469
        %s471 = vtos %v470
        %s472 = smul.f32 %s471, 0.00048828125
        %v473 = vmul.f32 %v456, %v456
        %v474 = vmul.f32 %v457, %v457
        %v475 = vadd.f32 %v473, %v474
        %476 = vadd.xlane.f32.xlu0 %v475
        %v477 = vpop.xlane.xlu0 %476
        %v478 = vrot.slane %v477, 4
        %v479 = vadd.f32 %v477, %v478
        %v480 = vrot.slane %v479, 2
        %v481 = vadd.f32 %v479, %v480
        %v482 = vrot.slane %v481, 1
        %v483 = vadd.f32 %v481, %v482
        %s484 = vtos %v483
        %s485 = smul.f32 %s484, 0.00048828125
        %s486 = smul.f32 %s472, %s472
        %s487 = ssub.f32 %s485, %s486
        %s488 = smax.f32 %s487, 0.0
        %s489 = sadd.f32 %s488, 1e-08
        %v490 = vstv %s489
        %v491 = vrsqrt.pop %v490
        %s492 = vtos %v491
        %v493 = vstv %s492
        %v494 = vmul.f32 %v458, %v493
        %v495 = vmul.f32 %v459, %v493
        %v496 = vstv %s472
        %v497 = vsub.f32 %v456, %v496
        %v498 = vsub.f32 %v457, %v496
        %500 = vset.pattern.permute.xlu0 0
        %501 = vperm.xlu0 %500, %v494
        %v502 = vpop.permute.xlu0 %501
        %505 = vset.pattern.permute.xlu0 0
        %506 = vperm.xlu0 %505, %v495
        %v507 = vpop.permute.xlu0 %506
        %v509 = vmul.f32 %v502, %v497
        %v510 = vmul.f32 %v507, %v498
        %512 = vset.pattern.permute.xlu0 0
        %513 = vperm.xlu0 %512, %v460
        %v514 = vpop.permute.xlu0 %513
        %517 = vset.pattern.permute.xlu0 0
        %518 = vperm.xlu0 %517, %v461
        %v519 = vpop.permute.xlu0 %518
        %v521 = vadd.f32 %v509, %v514
        %v522 = vadd.f32 %v510, %v519
        %v523 = vld [vmem:[%s5] sm:$0xff]
        %v524 = vld [vmem:[%s5 + $0x8] sm:$0xff]
        %525 = vrot.lane.b32.xlu0 %v521, 1
        %v526 = vpop.permute.xlu0 %525
        %527 = vrot.lane.b32.xlu0 %v522, 1
        %v528 = vpop.permute.xlu0 %527
        %vm529 = vcmp.ge.s32.totalorder %v356, 1
        %v530 = vsel %vm529, 1, 0
        %vm531 = vcmp.eq.s32.totalorder %v530, 1
        %v532 = vsel %vm531, %v526, 0.0
        %v533 = vsel %vm531, %v528, 0.0
        %535 = vset.pattern.permute.xlu0 0
        %536 = vperm.xlu0 %535, %v523
        %v537 = vpop.permute.xlu0 %536
        %540 = vset.pattern.permute.xlu0 0
        %541 = vperm.xlu0 %540, %v524
        %v542 = vpop.permute.xlu0 %541
        %v544 = vmul.f32 %v537, %v532
        %v545 = vmul.f32 %v542, %v533
        %v546 = vadd.f32 %v544, 0.0
        %v547 = vadd.f32 %v545, 0.0
        %548 = vset.pattern.permute.xlu0 1
        %549 = vperm.xlu0 %548, %v523
        %v550 = vpop.permute.xlu0 %549
        %552 = vset.pattern.permute.xlu0 1
        %553 = vperm.xlu0 %552, %v524
        %v554 = vpop.permute.xlu0 %553
        %v556 = vmul.f32 %v550, %v521
        %v557 = vmul.f32 %v554, %v522
        %v558 = vadd.f32 %v546, %v556
        %v559 = vadd.f32 %v547, %v557
        %560 = vrot.lane.b32.xlu0 %v521, 127
        %v561 = vpop.permute.xlu0 %560
        %562 = vrot.lane.b32.xlu0 %v522, 127
        %v563 = vpop.permute.xlu0 %562
        %vm564 = vcmp.lt.s32.totalorder %v356, 127
        %v565 = vsel %vm564, 1, 0
        %vm566 = vcmp.eq.s32.totalorder %v565, 1
        %v567 = vsel %vm566, %v561, 0.0
        %v568 = vsel %vm566, %v563, 0.0
        %569 = vset.pattern.permute.xlu0 2
        %570 = vperm.xlu0 %569, %v523
        %v571 = vpop.permute.xlu0 %570
        %573 = vset.pattern.permute.xlu0 2
        %574 = vperm.xlu0 %573, %v524
        %v575 = vpop.permute.xlu0 %574
        %v577 = vmul.f32 %v571, %v567
        %v578 = vmul.f32 %v575, %v568
        %v579 = vadd.f32 %v558, %v577
        %v580 = vadd.f32 %v559, %v578
        %v581 = vld [vmem:[%s6] sm:$0x1]
        %vm582 = vcmp.ge.f32.partialorder %v579, 0.0
        %vm583 = vcmp.ge.f32.partialorder %v580, 0.0
        %v585 = vlaneseq
        %v586 = vshrl.u32 %v585, 7
        %v587 = vsub.s32 0, %v586
        %v588 = vrot.slane %v581, %v587
        %589 = vset.pattern.permute.xlu0 0
        %590 = vperm.xlu0 %589, %v588
        %v591 = vpop.permute.xlu0 %590
        %v593 = vmul.f32 %v591, %v579
        %v594 = vmul.f32 %v591, %v580
        %v595 = vsel %vm582, %v579, %v593
        %v596 = vsel %vm583, %v580, %v594
        %v597 = vld [vmem:[%s7] sm:$0xff]
        %v598 = vld [vmem:[%s7 + $0x8] sm:$0xff]
        %v599 = vld [vmem:[%s8] sm:$0xff]
        %v600 = vld [vmem:[%s8 + $0x8] sm:$0xff]
        %v601 = vadd.f32 %v595, %v596
        %602 = vadd.xlane.f32.xlu0 %v601
        %v603 = vpop.xlane.xlu0 %602
        %v604 = vrot.slane %v603, 4
        %v605 = vadd.f32 %v603, %v604
        %v606 = vrot.slane %v605, 2
        %v607 = vadd.f32 %v605, %v606
        %v608 = vrot.slane %v607, 1
        %v609 = vadd.f32 %v607, %v608
        %s610 = vtos %v609
        %s611 = smul.f32 %s610, 0.00048828125
        %v612 = vmul.f32 %v595, %v595
        %v613 = vmul.f32 %v596, %v596
        %v614 = vadd.f32 %v612, %v613
        %615 = vadd.xlane.f32.xlu0 %v614
        %v616 = vpop.xlane.xlu0 %615
        %v617 = vrot.slane %v616, 4
        %v618 = vadd.f32 %v616, %v617
        %v619 = vrot.slane %v618, 2
        %v620 = vadd.f32 %v618, %v619
        %v621 = vrot.slane %v620, 1
        %v622 = vadd.f32 %v620, %v621
        %s623 = vtos %v622
        %s624 = smul.f32 %s623, 0.00048828125
        %s625 = smul.f32 %s611, %s611
        %s626 = ssub.f32 %s624, %s625
        %s627 = smax.f32 %s626, 0.0
        %s628 = sadd.f32 %s627, 1e-08
        %v629 = vstv %s628
        %v630 = vrsqrt.pop %v629
        %s631 = vtos %v630
        %v632 = vstv %s631
        %v633 = vmul.f32 %v597, %v632
        %v634 = vmul.f32 %v598, %v632
        %v635 = vstv %s611
        %v636 = vsub.f32 %v595, %v635
        %v637 = vsub.f32 %v596, %v635
        %639 = vset.pattern.permute.xlu0 0
        %640 = vperm.xlu0 %639, %v633
        %v641 = vpop.permute.xlu0 %640
        %644 = vset.pattern.permute.xlu0 0
        %645 = vperm.xlu0 %644, %v634
        %v646 = vpop.permute.xlu0 %645
        %v648 = vmul.f32 %v641, %v636
        %v649 = vmul.f32 %v646, %v637
        %651 = vset.pattern.permute.xlu0 0
        %652 = vperm.xlu0 %651, %v599
        %v653 = vpop.permute.xlu0 %652
        %656 = vset.pattern.permute.xlu0 0
        %657 = vperm.xlu0 %656, %v600
        %v658 = vpop.permute.xlu0 %657
        %v660 = vadd.f32 %v648, %v653
        %v661 = vadd.f32 %v649, %v658
        %v662 = vld [vmem:[%s9] sm:$0xff]
        %vm663 = vcmask 130048
        %v665 = vsel %vm663, %v662, 0
        %667 = vmatprep.subr.mxu0 0.0
        %668 = vmatpush1.msra.mxu0 0.0
        %669 = vmatprep.subr.mxu0 0.0
        %670 = vmatpush1.msra.mxu0 0.0
        %671 = vmatprep.subr.mxu0 0.0
        %672 = vmatpush1.msra.mxu0 0.0
        %673 = vmatprep.subr.mxu0 0.0
        %674 = vmatpush1.msra.mxu0 0.0
        %675 = vmatprep.subr.mxu0 0.0
        %676 = vmatpush1.msra.mxu0 0.0
        %677 = vmatprep.subr.mxu0 0.0
        %678 = vmatpush1.msra.mxu0 0.0
        %679 = vmatprep.subr.mxu0 0.0
        %680 = vmatpush1.msra.mxu0 0.0
        %681 = vmatprep.subr.mxu0 0.0
        %682 = vmatpush1.msra.mxu0 0.0
        %683 = vmatprep.subr.mxu0 0.0
        %684 = vmatpush1.msra.mxu0 0.0
        %685 = vmatprep.subr.mxu0 0.0
        %686 = vmatpush1.msra.mxu0 0.0
        %687 = vmatprep.subr.mxu0 0.0
        %688 = vmatpush1.msra.mxu0 0.0
        %689 = vmatprep.subr.mxu0 0.0
        %690 = vmatpush1.msra.mxu0 0.0
        %691 = vmatprep.subr.mxu0 0.0
        %692 = vmatpush1.msra.mxu0 0.0
        %693 = vmatprep.subr.mxu0 0.0
        %694 = vmatpush1.msra.mxu0 0.0
        %695 = vmatprep.subr.mxu0 0.0
        %696 = vmatpush1.msra.mxu0 %v661
        %697 = vmatprep.subr.mxu0 0.0
        %698 = vmatpush1.msra.mxu0 %v660
        %699 = vmatprep.subr.mxu0 0.0
        %700 = vmatpush2.msra.mxu0 0.0
        %701 = vmatprep.subr.mxu0 0.0
        %702 = vmatpush2.msra.mxu0 0.0
        %703 = vmatprep.subr.mxu0 0.0
        %704 = vmatpush2.msra.mxu0 0.0
        %705 = vmatprep.subr.mxu0 0.0
        %706 = vmatpush2.msra.mxu0 0.0
        %707 = vmatprep.subr.mxu0 0.0
        %708 = vmatpush2.msra.mxu0 0.0
        %709 = vmatprep.subr.mxu0 0.0
        %710 = vmatpush2.msra.mxu0 0.0
        %711 = vmatprep.subr.mxu0 0.0
        %712 = vmatpush2.msra.mxu0 0.0
        %713 = vmatprep.subr.mxu0 0.0
        %714 = vmatpush2.msra.mxu0 0.0
        %715 = vmatprep.subr.mxu0 0.0
        %716 = vmatpush2.msra.mxu0 0.0
        %717 = vmatprep.subr.mxu0 0.0
        %718 = vmatpush2.msra.mxu0 0.0
        %719 = vmatprep.subr.mxu0 0.0
        %720 = vmatpush2.msra.mxu0 0.0
        %721 = vmatprep.subr.mxu0 0.0
        %722 = vmatpush2.msra.mxu0 0.0
        %723 = vmatprep.subr.mxu0 0.0
        %724 = vmatpush2.msra.mxu0 0.0
        %725 = vmatprep.subr.mxu0 0.0
        %726 = vmatpush2.msra.mxu0 0.0
        %727 = vmatprep.subr.mxu0 0.0
        %728 = vmatpush2.msra.mxu0 0.0
        %729 = vmatprep.subr.mxu0 0.0
        %730 = vmatpush2.msra.mxu0 0.0
        %731 = vmatprep.mubr.f32.mxu0 0.0
        %732 = vmatmul.mubr.f32.gmra.mxu0 %v665
        %v733 = vpop.f32.mrf.mxu0
        %v734 = vadd.f32 0.0, %v733
        %v735 = vpop.f32.mrf.mxu0
        %736 = vdwg.mxu0
        %v737 = vadd.f32 %v357, %v734
        %s738 = scalar_lea.vmem %s1, 16
        %v739 = vld [vmem:[%s738] sm:$0xff]
        %v740 = vld [vmem:[%s738 + $0x8] sm:$0xff]
        %v742 = vsel %vm360, %v739, 0
        %v745 = vsel %vm360, %v740, 0
        %747 = vmatprep.subr.mxu0 0.0
        %748 = vmatpush1.msra.mxu0 0.0
        %749 = vmatprep.subr.mxu0 0.0
        %750 = vmatpush1.msra.mxu0 0.0
        %751 = vmatprep.subr.mxu0 0.0
        %752 = vmatpush1.msra.mxu0 0.0
        %753 = vmatprep.subr.mxu0 0.0
        %754 = vmatpush1.msra.mxu0 0.0
        %755 = vmatprep.subr.mxu0 0.0
        %756 = vmatpush1.msra.mxu0 0.0
        %757 = vmatprep.subr.mxu0 0.0
        %758 = vmatpush1.msra.mxu0 0.0
        %759 = vmatprep.subr.mxu0 0.0
        %760 = vmatpush1.msra.mxu0 0.0
        %761 = vmatprep.subr.mxu0 0.0
        %762 = vmatpush1.msra.mxu0 0.0
        %763 = vmatprep.subr.mxu0 0.0
        %764 = vmatpush1.msra.mxu0 0.0
        %765 = vmatprep.subr.mxu0 0.0
        %766 = vmatpush1.msra.mxu0 0.0
        %767 = vmatprep.subr.mxu0 0.0
        %768 = vmatpush1.msra.mxu0 0.0
        %769 = vmatprep.subr.mxu0 0.0
        %770 = vmatpush1.msra.mxu0 0.0
        %771 = vmatprep.subr.mxu0 0.0
        %772 = vmatpush1.msra.mxu0 0.0
        %773 = vmatprep.subr.mxu0 0.0
        %774 = vmatpush1.msra.mxu0 0.0
        %775 = vmatprep.subr.mxu0 0.0
        %776 = vmatpush1.msra.mxu0 0.0
        %777 = vmatprep.subr.mxu0 0.0
        %778 = vmatpush1.msra.mxu0 %v737
        %779 = vmatprep.subr.mxu0 0.0
        %780 = vmatpush2.msra.mxu0 0.0
        %781 = vmatprep.subr.mxu0 0.0
        %782 = vmatpush2.msra.mxu0 0.0
        %783 = vmatprep.subr.mxu0 0.0
        %784 = vmatpush2.msra.mxu0 0.0
        %785 = vmatprep.subr.mxu0 0.0
        %786 = vmatpush2.msra.mxu0 0.0
        %787 = vmatprep.subr.mxu0 0.0
        %788 = vmatpush2.msra.mxu0 0.0
        %789 = vmatprep.subr.mxu0 0.0
        %790 = vmatpush2.msra.mxu0 0.0
        %791 = vmatprep.subr.mxu0 0.0
        %792 = vmatpush2.msra.mxu0 0.0
        %793 = vmatprep.subr.mxu0 0.0
        %794 = vmatpush2.msra.mxu0 0.0
        %795 = vmatprep.subr.mxu0 0.0
        %796 = vmatpush2.msra.mxu0 0.0
        %797 = vmatprep.subr.mxu0 0.0
        %798 = vmatpush2.msra.mxu0 0.0
        %799 = vmatprep.subr.mxu0 0.0
        %800 = vmatpush2.msra.mxu0 0.0
        %801 = vmatprep.subr.mxu0 0.0
        %802 = vmatpush2.msra.mxu0 0.0
        %803 = vmatprep.subr.mxu0 0.0
        %804 = vmatpush2.msra.mxu0 0.0
        %805 = vmatprep.subr.mxu0 0.0
        %806 = vmatpush2.msra.mxu0 0.0
        %807 = vmatprep.subr.mxu0 0.0
        %808 = vmatpush2.msra.mxu0 0.0
        %809 = vmatprep.subr.mxu0 0.0
        %810 = vmatpush2.msra.mxu0 0.0
        %811 = vmatprep.mubr.f32.mxu0 0.0
        %812 = vmatmul.mubr.f32.gmra.mxu0 %v742
        %v813 = vpop.f32.mrf.mxu0
        %v814 = vadd.f32 0.0, %v813
        %v815 = vpop.f32.mrf.mxu0
        %816 = vmatprep.mubr.f32.mxu0 0.0
        %817 = vmatmul.mubr.f32.gmra.mxu0 %v745
        %v818 = vpop.f32.mrf.mxu0
        %v819 = vadd.f32 0.0, %v818
        %v820 = vpop.f32.mrf.mxu0
        %821 = vdwg.mxu0
        %s822 = scalar_lea.vmem %s2, 1
        %v823 = vld [vmem:[%s822] sm:$0x1]
        %vm824 = vcmp.ge.f32.partialorder %v814, 0.0
        %vm825 = vcmp.ge.f32.partialorder %v819, 0.0
        %v827 = vlaneseq
        %v828 = vshrl.u32 %v827, 7
        %v829 = vsub.s32 0, %v828
        %v830 = vrot.slane %v823, %v829
        %831 = vset.pattern.permute.xlu0 0
        %832 = vperm.xlu0 %831, %v830
        %v833 = vpop.permute.xlu0 %832
        %v835 = vmul.f32 %v833, %v814
        %v836 = vmul.f32 %v833, %v819
        %v837 = vsel %vm824, %v814, %v835
        %v838 = vsel %vm825, %v819, %v836
        %s839 = scalar_lea.vmem %s3, 16
        %v840 = vld [vmem:[%s839] sm:$0xff]
        %v841 = vld [vmem:[%s839 + $0x8] sm:$0xff]
        %s842 = scalar_lea.vmem %s4, 16
        %v843 = vld [vmem:[%s842] sm:$0xff]
        %v844 = vld [vmem:[%s842 + $0x8] sm:$0xff]
        %v845 = vadd.f32 %v837, %v838
        %846 = vadd.xlane.f32.xlu0 %v845
        %v847 = vpop.xlane.xlu0 %846
        %v848 = vrot.slane %v847, 4
        %v849 = vadd.f32 %v847, %v848
        %v850 = vrot.slane %v849, 2
        %v851 = vadd.f32 %v849, %v850
        %v852 = vrot.slane %v851, 1
        %v853 = vadd.f32 %v851, %v852
        %s854 = vtos %v853
        %s855 = smul.f32 %s854, 0.00048828125
        %v856 = vmul.f32 %v837, %v837
        %v857 = vmul.f32 %v838, %v838
        %v858 = vadd.f32 %v856, %v857
        %859 = vadd.xlane.f32.xlu0 %v858
        %v860 = vpop.xlane.xlu0 %859
        %v861 = vrot.slane %v860, 4
        %v862 = vadd.f32 %v860, %v861
        %v863 = vrot.slane %v862, 2
        %v864 = vadd.f32 %v862, %v863
        %v865 = vrot.slane %v864, 1
        %v866 = vadd.f32 %v864, %v865
        %s867 = vtos %v866
        %s868 = smul.f32 %s867, 0.00048828125
        %s869 = smul.f32 %s855, %s855
        %s870 = ssub.f32 %s868, %s869
        %s871 = smax.f32 %s870, 0.0
        %s872 = sadd.f32 %s871, 1e-08
        %v873 = vstv %s872
        %v874 = vrsqrt.pop %v873
        %s875 = vtos %v874
        %v876 = vstv %s875
        %v877 = vmul.f32 %v840, %v876
        %v878 = vmul.f32 %v841, %v876
        %v879 = vstv %s855
        %v880 = vsub.f32 %v837, %v879
        %v881 = vsub.f32 %v838, %v879
        %883 = vset.pattern.permute.xlu0 0
        %884 = vperm.xlu0 %883, %v877
        %v885 = vpop.permute.xlu0 %884
        %888 = vset.pattern.permute.xlu0 0
        %889 = vperm.xlu0 %888, %v878
        %v890 = vpop.permute.xlu0 %889
        %v892 = vmul.f32 %v885, %v880
        %v893 = vmul.f32 %v890, %v881
        %895 = vset.pattern.permute.xlu0 0
        %896 = vperm.xlu0 %895, %v843
        %v897 = vpop.permute.xlu0 %896
        %900 = vset.pattern.permute.xlu0 0
        %901 = vperm.xlu0 %900, %v844
        %v902 = vpop.permute.xlu0 %901
        %v904 = vadd.f32 %v892, %v897
        %v905 = vadd.f32 %v893, %v902
        %s906 = scalar_lea.vmem %s5, 16
        %v907 = vld [vmem:[%s906] sm:$0xff]
        %v908 = vld [vmem:[%s906 + $0x8] sm:$0xff]
        %909 = vrot.lane.b32.xlu0 %v904, 2
        %v910 = vpop.permute.xlu0 %909
        %911 = vrot.lane.b32.xlu0 %v905, 2
        %v912 = vpop.permute.xlu0 %911
        %vm913 = vcmp.ge.s32.totalorder %v356, 2
        %v914 = vsel %vm913, 1, 0
        %vm915 = vcmp.eq.s32.totalorder %v914, 1
        %v916 = vsel %vm915, %v910, 0.0
        %v917 = vsel %vm915, %v912, 0.0
        %919 = vset.pattern.permute.xlu0 0
        %920 = vperm.xlu0 %919, %v907
        %v921 = vpop.permute.xlu0 %920
        %924 = vset.pattern.permute.xlu0 0
        %925 = vperm.xlu0 %924, %v908
        %v926 = vpop.permute.xlu0 %925
        %v928 = vmul.f32 %v921, %v916
        %v929 = vmul.f32 %v926, %v917
        %v930 = vadd.f32 %v928, 0.0
        %v931 = vadd.f32 %v929, 0.0
        %932 = vset.pattern.permute.xlu0 1
        %933 = vperm.xlu0 %932, %v907
        %v934 = vpop.permute.xlu0 %933
        %936 = vset.pattern.permute.xlu0 1
        %937 = vperm.xlu0 %936, %v908
        %v938 = vpop.permute.xlu0 %937
        %v940 = vmul.f32 %v934, %v904
        %v941 = vmul.f32 %v938, %v905
        %v942 = vadd.f32 %v930, %v940
        %v943 = vadd.f32 %v931, %v941
        %944 = vrot.lane.b32.xlu0 %v904, 126
        %v945 = vpop.permute.xlu0 %944
        %946 = vrot.lane.b32.xlu0 %v905, 126
        %v947 = vpop.permute.xlu0 %946
        %vm948 = vcmp.lt.s32.totalorder %v356, 126
        %v949 = vsel %vm948, 1, 0
        %vm950 = vcmp.eq.s32.totalorder %v949, 1
        %v951 = vsel %vm950, %v945, 0.0
        %v952 = vsel %vm950, %v947, 0.0
        %953 = vset.pattern.permute.xlu0 2
        %954 = vperm.xlu0 %953, %v907
        %v955 = vpop.permute.xlu0 %954
        %957 = vset.pattern.permute.xlu0 2
        %958 = vperm.xlu0 %957, %v908
        %v959 = vpop.permute.xlu0 %958
        %v961 = vmul.f32 %v955, %v951
        %v962 = vmul.f32 %v959, %v952
        %v963 = vadd.f32 %v942, %v961
        %v964 = vadd.f32 %v943, %v962
        %s965 = scalar_lea.vmem %s6, 1
        %v966 = vld [vmem:[%s965] sm:$0x1]
        %vm967 = vcmp.ge.f32.partialorder %v963, 0.0
        %vm968 = vcmp.ge.f32.partialorder %v964, 0.0
        %v970 = vlaneseq
        %v971 = vshrl.u32 %v970, 7
        %v972 = vsub.s32 0, %v971
        %v973 = vrot.slane %v966, %v972
        %974 = vset.pattern.permute.xlu0 0
        %975 = vperm.xlu0 %974, %v973
        %v976 = vpop.permute.xlu0 %975
        %v978 = vmul.f32 %v976, %v963
        %v979 = vmul.f32 %v976, %v964
        %v980 = vsel %vm967, %v963, %v978
        %v981 = vsel %vm968, %v964, %v979
        %s982 = scalar_lea.vmem %s7, 16
        %v983 = vld [vmem:[%s982] sm:$0xff]
        %v984 = vld [vmem:[%s982 + $0x8] sm:$0xff]
        %s985 = scalar_lea.vmem %s8, 16
        %v986 = vld [vmem:[%s985] sm:$0xff]
        %v987 = vld [vmem:[%s985 + $0x8] sm:$0xff]
        %v988 = vadd.f32 %v980, %v981
        %989 = vadd.xlane.f32.xlu0 %v988
        %v990 = vpop.xlane.xlu0 %989
        %v991 = vrot.slane %v990, 4
        %v992 = vadd.f32 %v990, %v991
        %v993 = vrot.slane %v992, 2
        %v994 = vadd.f32 %v992, %v993
        %v995 = vrot.slane %v994, 1
        %v996 = vadd.f32 %v994, %v995
        %s997 = vtos %v996
        %s998 = smul.f32 %s997, 0.00048828125
        %v999 = vmul.f32 %v980, %v980
        %v1000 = vmul.f32 %v981, %v981
        %v1001 = vadd.f32 %v999, %v1000
        %1002 = vadd.xlane.f32.xlu0 %v1001
        %v1003 = vpop.xlane.xlu0 %1002
        %v1004 = vrot.slane %v1003, 4
        %v1005 = vadd.f32 %v1003, %v1004
        %v1006 = vrot.slane %v1005, 2
        %v1007 = vadd.f32 %v1005, %v1006
        %v1008 = vrot.slane %v1007, 1
        %v1009 = vadd.f32 %v1007, %v1008
        %s1010 = vtos %v1009
        %s1011 = smul.f32 %s1010, 0.00048828125
        %s1012 = smul.f32 %s998, %s998
        %s1013 = ssub.f32 %s1011, %s1012
        %s1014 = smax.f32 %s1013, 0.0
        %s1015 = sadd.f32 %s1014, 1e-08
        %v1016 = vstv %s1015
        %v1017 = vrsqrt.pop %v1016
        %s1018 = vtos %v1017
        %v1019 = vstv %s1018
        %v1020 = vmul.f32 %v983, %v1019
        %v1021 = vmul.f32 %v984, %v1019
        %v1022 = vstv %s998
        %v1023 = vsub.f32 %v980, %v1022
        %v1024 = vsub.f32 %v981, %v1022
        %1026 = vset.pattern.permute.xlu0 0
        %1027 = vperm.xlu0 %1026, %v1020
        %v1028 = vpop.permute.xlu0 %1027
        %1031 = vset.pattern.permute.xlu0 0
        %1032 = vperm.xlu0 %1031, %v1021
        %v1033 = vpop.permute.xlu0 %1032
        %v1035 = vmul.f32 %v1028, %v1023
        %v1036 = vmul.f32 %v1033, %v1024
        %1038 = vset.pattern.permute.xlu0 0
        %1039 = vperm.xlu0 %1038, %v986
        %v1040 = vpop.permute.xlu0 %1039
        %1043 = vset.pattern.permute.xlu0 0
        %1044 = vperm.xlu0 %1043, %v987
        %v1045 = vpop.permute.xlu0 %1044
        %v1047 = vadd.f32 %v1035, %v1040
        %v1048 = vadd.f32 %v1036, %v1045
        %s1049 = scalar_lea.vmem %s9, 8
        %v1050 = vld [vmem:[%s1049] sm:$0xff]
        %v1052 = vsel %vm663, %v1050, 0
        %1054 = vmatprep.subr.mxu0 0.0
        %1055 = vmatpush1.msra.mxu0 0.0
        %1056 = vmatprep.subr.mxu0 0.0
        %1057 = vmatpush1.msra.mxu0 0.0
        %1058 = vmatprep.subr.mxu0 0.0
        %1059 = vmatpush1.msra.mxu0 0.0
        %1060 = vmatprep.subr.mxu0 0.0
        %1061 = vmatpush1.msra.mxu0 0.0
        %1062 = vmatprep.subr.mxu0 0.0
        %1063 = vmatpush1.msra.mxu0 0.0
        %1064 = vmatprep.subr.mxu0 0.0
        %1065 = vmatpush1.msra.mxu0 0.0
        %1066 = vmatprep.subr.mxu0 0.0
        %1067 = vmatpush1.msra.mxu0 0.0
        %1068 = vmatprep.subr.mxu0 0.0
        %1069 = vmatpush1.msra.mxu0 0.0
        %1070 = vmatprep.subr.mxu0 0.0
        %1071 = vmatpush1.msra.mxu0 0.0
        %1072 = vmatprep.subr.mxu0 0.0
        %1073 = vmatpush1.msra.mxu0 0.0
        %1074 = vmatprep.subr.mxu0 0.0
        %1075 = vmatpush1.msra.mxu0 0.0
        %1076 = vmatprep.subr.mxu0 0.0
        %1077 = vmatpush1.msra.mxu0 0.0
        %1078 = vmatprep.subr.mxu0 0.0
        %1079 = vmatpush1.msra.mxu0 0.0
        %1080 = vmatprep.subr.mxu0 0.0
        %1081 = vmatpush1.msra.mxu0 0.0
        %1082 = vmatprep.subr.mxu0 0.0
        %1083 = vmatpush1.msra.mxu0 %v1048
        %1084 = vmatprep.subr.mxu0 0.0
        %1085 = vmatpush1.msra.mxu0 %v1047
        %1086 = vmatprep.subr.mxu0 0.0
        %1087 = vmatpush2.msra.mxu0 0.0
        %1088 = vmatprep.subr.mxu0 0.0
        %1089 = vmatpush2.msra.mxu0 0.0
        %1090 = vmatprep.subr.mxu0 0.0
        %1091 = vmatpush2.msra.mxu0 0.0
        %1092 = vmatprep.subr.mxu0 0.0
        %1093 = vmatpush2.msra.mxu0 0.0
        %1094 = vmatprep.subr.mxu0 0.0
        %1095 = vmatpush2.msra.mxu0 0.0
        %1096 = vmatprep.subr.mxu0 0.0
        %1097 = vmatpush2.msra.mxu0 0.0
        %1098 = vmatprep.subr.mxu0 0.0
        %1099 = vmatpush2.msra.mxu0 0.0
        %1100 = vmatprep.subr.mxu0 0.0
        %1101 = vmatpush2.msra.mxu0 0.0
        %1102 = vmatprep.subr.mxu0 0.0
        %1103 = vmatpush2.msra.mxu0 0.0
        %1104 = vmatprep.subr.mxu0 0.0
        %1105 = vmatpush2.msra.mxu0 0.0
        %1106 = vmatprep.subr.mxu0 0.0
        %1107 = vmatpush2.msra.mxu0 0.0
        %1108 = vmatprep.subr.mxu0 0.0
        %1109 = vmatpush2.msra.mxu0 0.0
        %1110 = vmatprep.subr.mxu0 0.0
        %1111 = vmatpush2.msra.mxu0 0.0
        %1112 = vmatprep.subr.mxu0 0.0
        %1113 = vmatpush2.msra.mxu0 0.0
        %1114 = vmatprep.subr.mxu0 0.0
        %1115 = vmatpush2.msra.mxu0 0.0
        %1116 = vmatprep.subr.mxu0 0.0
        %1117 = vmatpush2.msra.mxu0 0.0
        %1118 = vmatprep.mubr.f32.mxu0 0.0
        %1119 = vmatmul.mubr.f32.gmra.mxu0 %v1052
        %v1120 = vpop.f32.mrf.mxu0
        %v1121 = vadd.f32 0.0, %v1120
        %v1122 = vpop.f32.mrf.mxu0
        %1123 = vdwg.mxu0
        %v1124 = vadd.f32 %v737, %v1121
        %s1125 = scalar_lea.vmem %s1, 32
        %v1126 = vld [vmem:[%s1125] sm:$0xff]
        %v1127 = vld [vmem:[%s1125 + $0x8] sm:$0xff]
        %v1129 = vsel %vm360, %v1126, 0
        %v1132 = vsel %vm360, %v1127, 0
        %1134 = vmatprep.subr.mxu0 0.0
        %1135 = vmatpush1.msra.mxu0 0.0
        %1136 = vmatprep.subr.mxu0 0.0
        %1137 = vmatpush1.msra.mxu0 0.0
        %1138 = vmatprep.subr.mxu0 0.0
        %1139 = vmatpush1.msra.mxu0 0.0
        %1140 = vmatprep.subr.mxu0 0.0
        %1141 = vmatpush1.msra.mxu0 0.0
        %1142 = vmatprep.subr.mxu0 0.0
        %1143 = vmatpush1.msra.mxu0 0.0
        %1144 = vmatprep.subr.mxu0 0.0
        %1145 = vmatpush1.msra.mxu0 0.0
        %1146 = vmatprep.subr.mxu0 0.0
        %1147 = vmatpush1.msra.mxu0 0.0
        %1148 = vmatprep.subr.mxu0 0.0
        %1149 = vmatpush1.msra.mxu0 0.0
        %1150 = vmatprep.subr.mxu0 0.0
        %1151 = vmatpush1.msra.mxu0 0.0
        %1152 = vmatprep.subr.mxu0 0.0
        %1153 = vmatpush1.msra.mxu0 0.0
        %1154 = vmatprep.subr.mxu0 0.0
        %1155 = vmatpush1.msra.mxu0 0.0
        %1156 = vmatprep.subr.mxu0 0.0
        %1157 = vmatpush1.msra.mxu0 0.0
        %1158 = vmatprep.subr.mxu0 0.0
        %1159 = vmatpush1.msra.mxu0 0.0
        %1160 = vmatprep.subr.mxu0 0.0
        %1161 = vmatpush1.msra.mxu0 0.0
        %1162 = vmatprep.subr.mxu0 0.0
        %1163 = vmatpush1.msra.mxu0 0.0
        %1164 = vmatprep.subr.mxu0 0.0
        %1165 = vmatpush1.msra.mxu0 %v1124
        %1166 = vmatprep.subr.mxu0 0.0
        %1167 = vmatpush2.msra.mxu0 0.0
        %1168 = vmatprep.subr.mxu0 0.0
        %1169 = vmatpush2.msra.mxu0 0.0
        %1170 = vmatprep.subr.mxu0 0.0
        %1171 = vmatpush2.msra.mxu0 0.0
        %1172 = vmatprep.subr.mxu0 0.0
        %1173 = vmatpush2.msra.mxu0 0.0
        %1174 = vmatprep.subr.mxu0 0.0
        %1175 = vmatpush2.msra.mxu0 0.0
        %1176 = vmatprep.subr.mxu0 0.0
        %1177 = vmatpush2.msra.mxu0 0.0
        %1178 = vmatprep.subr.mxu0 0.0
        %1179 = vmatpush2.msra.mxu0 0.0
        %1180 = vmatprep.subr.mxu0 0.0
        %1181 = vmatpush2.msra.mxu0 0.0
        %1182 = vmatprep.subr.mxu0 0.0
        %1183 = vmatpush2.msra.mxu0 0.0
        %1184 = vmatprep.subr.mxu0 0.0
        %1185 = vmatpush2.msra.mxu0 0.0
        %1186 = vmatprep.subr.mxu0 0.0
        %1187 = vmatpush2.msra.mxu0 0.0
        %1188 = vmatprep.subr.mxu0 0.0
        %1189 = vmatpush2.msra.mxu0 0.0
        %1190 = vmatprep.subr.mxu0 0.0
        %1191 = vmatpush2.msra.mxu0 0.0
        %1192 = vmatprep.subr.mxu0 0.0
        %1193 = vmatpush2.msra.mxu0 0.0
        %1194 = vmatprep.subr.mxu0 0.0
        %1195 = vmatpush2.msra.mxu0 0.0
        %1196 = vmatprep.subr.mxu0 0.0
        %1197 = vmatpush2.msra.mxu0 0.0
        %1198 = vmatprep.mubr.f32.mxu0 0.0
        %1199 = vmatmul.mubr.f32.gmra.mxu0 %v1129
        %v1200 = vpop.f32.mrf.mxu0
        %v1201 = vadd.f32 0.0, %v1200
        %v1202 = vpop.f32.mrf.mxu0
        %1203 = vmatprep.mubr.f32.mxu0 0.0
        %1204 = vmatmul.mubr.f32.gmra.mxu0 %v1132
        %v1205 = vpop.f32.mrf.mxu0
        %v1206 = vadd.f32 0.0, %v1205
        %v1207 = vpop.f32.mrf.mxu0
        %1208 = vdwg.mxu0
        %s1209 = scalar_lea.vmem %s2, 2
        %v1210 = vld [vmem:[%s1209] sm:$0x1]
        %vm1211 = vcmp.ge.f32.partialorder %v1201, 0.0
        %vm1212 = vcmp.ge.f32.partialorder %v1206, 0.0
        %v1214 = vlaneseq
        %v1215 = vshrl.u32 %v1214, 7
        %v1216 = vsub.s32 0, %v1215
        %v1217 = vrot.slane %v1210, %v1216
        %1218 = vset.pattern.permute.xlu0 0
        %1219 = vperm.xlu0 %1218, %v1217
        %v1220 = vpop.permute.xlu0 %1219
        %v1222 = vmul.f32 %v1220, %v1201
        %v1223 = vmul.f32 %v1220, %v1206
        %v1224 = vsel %vm1211, %v1201, %v1222
        %v1225 = vsel %vm1212, %v1206, %v1223
        %s1226 = scalar_lea.vmem %s3, 32
        %v1227 = vld [vmem:[%s1226] sm:$0xff]
        %v1228 = vld [vmem:[%s1226 + $0x8] sm:$0xff]
        %s1229 = scalar_lea.vmem %s4, 32
        %v1230 = vld [vmem:[%s1229] sm:$0xff]
        %v1231 = vld [vmem:[%s1229 + $0x8] sm:$0xff]
        %v1232 = vadd.f32 %v1224, %v1225
        %1233 = vadd.xlane.f32.xlu0 %v1232
        %v1234 = vpop.xlane.xlu0 %1233
        %v1235 = vrot.slane %v1234, 4
        %v1236 = vadd.f32 %v1234, %v1235
        %v1237 = vrot.slane %v1236, 2
        %v1238 = vadd.f32 %v1236, %v1237
        %v1239 = vrot.slane %v1238, 1
        %v1240 = vadd.f32 %v1238, %v1239
        %s1241 = vtos %v1240
        %s1242 = smul.f32 %s1241, 0.00048828125
        %v1243 = vmul.f32 %v1224, %v1224
        %v1244 = vmul.f32 %v1225, %v1225
        %v1245 = vadd.f32 %v1243, %v1244
        %1246 = vadd.xlane.f32.xlu0 %v1245
        %v1247 = vpop.xlane.xlu0 %1246
        %v1248 = vrot.slane %v1247, 4
        %v1249 = vadd.f32 %v1247, %v1248
        %v1250 = vrot.slane %v1249, 2
        %v1251 = vadd.f32 %v1249, %v1250
        %v1252 = vrot.slane %v1251, 1
        %v1253 = vadd.f32 %v1251, %v1252
        %s1254 = vtos %v1253
        %s1255 = smul.f32 %s1254, 0.00048828125
        %s1256 = smul.f32 %s1242, %s1242
        %s1257 = ssub.f32 %s1255, %s1256
        %s1258 = smax.f32 %s1257, 0.0
        %s1259 = sadd.f32 %s1258, 1e-08
        %v1260 = vstv %s1259
        %v1261 = vrsqrt.pop %v1260
        %s1262 = vtos %v1261
        %v1263 = vstv %s1262
        %v1264 = vmul.f32 %v1227, %v1263
        %v1265 = vmul.f32 %v1228, %v1263
        %v1266 = vstv %s1242
        %v1267 = vsub.f32 %v1224, %v1266
        %v1268 = vsub.f32 %v1225, %v1266
        %1270 = vset.pattern.permute.xlu0 0
        %1271 = vperm.xlu0 %1270, %v1264
        %v1272 = vpop.permute.xlu0 %1271
        %1275 = vset.pattern.permute.xlu0 0
        %1276 = vperm.xlu0 %1275, %v1265
        %v1277 = vpop.permute.xlu0 %1276
        %v1279 = vmul.f32 %v1272, %v1267
        %v1280 = vmul.f32 %v1277, %v1268
        %1282 = vset.pattern.permute.xlu0 0
        %1283 = vperm.xlu0 %1282, %v1230
        %v1284 = vpop.permute.xlu0 %1283
        %1287 = vset.pattern.permute.xlu0 0
        %1288 = vperm.xlu0 %1287, %v1231
        %v1289 = vpop.permute.xlu0 %1288
        %v1291 = vadd.f32 %v1279, %v1284
        %v1292 = vadd.f32 %v1280, %v1289
        %s1293 = scalar_lea.vmem %s5, 32
        %v1294 = vld [vmem:[%s1293] sm:$0xff]
        %v1295 = vld [vmem:[%s1293 + $0x8] sm:$0xff]
        %1296 = vrot.lane.b32.xlu0 %v1291, 4
        %v1297 = vpop.permute.xlu0 %1296
        %1298 = vrot.lane.b32.xlu0 %v1292, 4
        %v1299 = vpop.permute.xlu0 %1298
        %vm1300 = vcmp.ge.s32.totalorder %v356, 4
        %v1301 = vsel %vm1300, 1, 0
        %vm1302 = vcmp.eq.s32.totalorder %v1301, 1
        %v1303 = vsel %vm1302, %v1297, 0.0
        %v1304 = vsel %vm1302, %v1299, 0.0
        %1306 = vset.pattern.permute.xlu0 0
        %1307 = vperm.xlu0 %1306, %v1294
        %v1308 = vpop.permute.xlu0 %1307
        %1311 = vset.pattern.permute.xlu0 0
        %1312 = vperm.xlu0 %1311, %v1295
        %v1313 = vpop.permute.xlu0 %1312
        %v1315 = vmul.f32 %v1308, %v1303
        %v1316 = vmul.f32 %v1313, %v1304
        %v1317 = vadd.f32 %v1315, 0.0
        %v1318 = vadd.f32 %v1316, 0.0
        %1319 = vset.pattern.permute.xlu0 1
        %1320 = vperm.xlu0 %1319, %v1294
        %v1321 = vpop.permute.xlu0 %1320
        %1323 = vset.pattern.permute.xlu0 1
        %1324 = vperm.xlu0 %1323, %v1295
        %v1325 = vpop.permute.xlu0 %1324
        %v1327 = vmul.f32 %v1321, %v1291
        %v1328 = vmul.f32 %v1325, %v1292
        %v1329 = vadd.f32 %v1317, %v1327
        %v1330 = vadd.f32 %v1318, %v1328
        %1331 = vrot.lane.b32.xlu0 %v1291, 124
        %v1332 = vpop.permute.xlu0 %1331
        %1333 = vrot.lane.b32.xlu0 %v1292, 124
        %v1334 = vpop.permute.xlu0 %1333
        %vm1335 = vcmp.lt.s32.totalorder %v356, 124
        %v1336 = vsel %vm1335, 1, 0
        %vm1337 = vcmp.eq.s32.totalorder %v1336, 1
        %v1338 = vsel %vm1337, %v1332, 0.0
        %v1339 = vsel %vm1337, %v1334, 0.0
        %1340 = vset.pattern.permute.xlu0 2
        %1341 = vperm.xlu0 %1340, %v1294
        %v1342 = vpop.permute.xlu0 %1341
        %1344 = vset.pattern.permute.xlu0 2
        %1345 = vperm.xlu0 %1344, %v1295
        %v1346 = vpop.permute.xlu0 %1345
        %v1348 = vmul.f32 %v1342, %v1338
        %v1349 = vmul.f32 %v1346, %v1339
        %v1350 = vadd.f32 %v1329, %v1348
        %v1351 = vadd.f32 %v1330, %v1349
        %s1352 = scalar_lea.vmem %s6, 2
        %v1353 = vld [vmem:[%s1352] sm:$0x1]
        %vm1354 = vcmp.ge.f32.partialorder %v1350, 0.0
        %vm1355 = vcmp.ge.f32.partialorder %v1351, 0.0
        %v1357 = vlaneseq
        %v1358 = vshrl.u32 %v1357, 7
        %v1359 = vsub.s32 0, %v1358
        %v1360 = vrot.slane %v1353, %v1359
        %1361 = vset.pattern.permute.xlu0 0
        %1362 = vperm.xlu0 %1361, %v1360
        %v1363 = vpop.permute.xlu0 %1362
        %v1365 = vmul.f32 %v1363, %v1350
        %v1366 = vmul.f32 %v1363, %v1351
        %v1367 = vsel %vm1354, %v1350, %v1365
        %v1368 = vsel %vm1355, %v1351, %v1366
        %s1369 = scalar_lea.vmem %s7, 32
        %v1370 = vld [vmem:[%s1369] sm:$0xff]
        %v1371 = vld [vmem:[%s1369 + $0x8] sm:$0xff]
        %s1372 = scalar_lea.vmem %s8, 32
        %v1373 = vld [vmem:[%s1372] sm:$0xff]
        %v1374 = vld [vmem:[%s1372 + $0x8] sm:$0xff]
        %v1375 = vadd.f32 %v1367, %v1368
        %1376 = vadd.xlane.f32.xlu0 %v1375
        %v1377 = vpop.xlane.xlu0 %1376
        %v1378 = vrot.slane %v1377, 4
        %v1379 = vadd.f32 %v1377, %v1378
        %v1380 = vrot.slane %v1379, 2
        %v1381 = vadd.f32 %v1379, %v1380
        %v1382 = vrot.slane %v1381, 1
        %v1383 = vadd.f32 %v1381, %v1382
        %s1384 = vtos %v1383
        %s1385 = smul.f32 %s1384, 0.00048828125
        %v1386 = vmul.f32 %v1367, %v1367
        %v1387 = vmul.f32 %v1368, %v1368
        %v1388 = vadd.f32 %v1386, %v1387
        %1389 = vadd.xlane.f32.xlu0 %v1388
        %v1390 = vpop.xlane.xlu0 %1389
        %v1391 = vrot.slane %v1390, 4
        %v1392 = vadd.f32 %v1390, %v1391
        %v1393 = vrot.slane %v1392, 2
        %v1394 = vadd.f32 %v1392, %v1393
        %v1395 = vrot.slane %v1394, 1
        %v1396 = vadd.f32 %v1394, %v1395
        %s1397 = vtos %v1396
        %s1398 = smul.f32 %s1397, 0.00048828125
        %s1399 = smul.f32 %s1385, %s1385
        %s1400 = ssub.f32 %s1398, %s1399
        %s1401 = smax.f32 %s1400, 0.0
        %s1402 = sadd.f32 %s1401, 1e-08
        %v1403 = vstv %s1402
        %v1404 = vrsqrt.pop %v1403
        %s1405 = vtos %v1404
        %v1406 = vstv %s1405
        %v1407 = vmul.f32 %v1370, %v1406
        %v1408 = vmul.f32 %v1371, %v1406
        %v1409 = vstv %s1385
        %v1410 = vsub.f32 %v1367, %v1409
        %v1411 = vsub.f32 %v1368, %v1409
        %1413 = vset.pattern.permute.xlu0 0
        %1414 = vperm.xlu0 %1413, %v1407
        %v1415 = vpop.permute.xlu0 %1414
        %1418 = vset.pattern.permute.xlu0 0
        %1419 = vperm.xlu0 %1418, %v1408
        %v1420 = vpop.permute.xlu0 %1419
        %v1422 = vmul.f32 %v1415, %v1410
        %v1423 = vmul.f32 %v1420, %v1411
        %1425 = vset.pattern.permute.xlu0 0
        %1426 = vperm.xlu0 %1425, %v1373
        %v1427 = vpop.permute.xlu0 %1426
        %1430 = vset.pattern.permute.xlu0 0
        %1431 = vperm.xlu0 %1430, %v1374
        %v1432 = vpop.permute.xlu0 %1431
        %v1434 = vadd.f32 %v1422, %v1427
        %v1435 = vadd.f32 %v1423, %v1432
        %s1436 = scalar_lea.vmem %s9, 16
        %v1437 = vld [vmem:[%s1436] sm:$0xff]
        %v1439 = vsel %vm663, %v1437, 0
        %1441 = vmatprep.subr.mxu0 0.0
        %1442 = vmatpush1.msra.mxu0 0.0
        %1443 = vmatprep.subr.mxu0 0.0
        %1444 = vmatpush1.msra.mxu0 0.0
        %1445 = vmatprep.subr.mxu0 0.0
        %1446 = vmatpush1.msra.mxu0 0.0
        %1447 = vmatprep.subr.mxu0 0.0
        %1448 = vmatpush1.msra.mxu0 0.0
        %1449 = vmatprep.subr.mxu0 0.0
        %1450 = vmatpush1.msra.mxu0 0.0
        %1451 = vmatprep.subr.mxu0 0.0
        %1452 = vmatpush1.msra.mxu0 0.0
        %1453 = vmatprep.subr.mxu0 0.0
        %1454 = vmatpush1.msra.mxu0 0.0
        %1455 = vmatprep.subr.mxu0 0.0
        %1456 = vmatpush1.msra.mxu0 0.0
        %1457 = vmatprep.subr.mxu0 0.0
        %1458 = vmatpush1.msra.mxu0 0.0
        %1459 = vmatprep.subr.mxu0 0.0
        %1460 = vmatpush1.msra.mxu0 0.0
        %1461 = vmatprep.subr.mxu0 0.0
        %1462 = vmatpush1.msra.mxu0 0.0
        %1463 = vmatprep.subr.mxu0 0.0
        %1464 = vmatpush1.msra.mxu0 0.0
        %1465 = vmatprep.subr.mxu0 0.0
        %1466 = vmatpush1.msra.mxu0 0.0
        %1467 = vmatprep.subr.mxu0 0.0
        %1468 = vmatpush1.msra.mxu0 0.0
        %1469 = vmatprep.subr.mxu0 0.0
        %1470 = vmatpush1.msra.mxu0 %v1435
        %1471 = vmatprep.subr.mxu0 0.0
        %1472 = vmatpush1.msra.mxu0 %v1434
        %1473 = vmatprep.subr.mxu0 0.0
        %1474 = vmatpush2.msra.mxu0 0.0
        %1475 = vmatprep.subr.mxu0 0.0
        %1476 = vmatpush2.msra.mxu0 0.0
        %1477 = vmatprep.subr.mxu0 0.0
        %1478 = vmatpush2.msra.mxu0 0.0
        %1479 = vmatprep.subr.mxu0 0.0
        %1480 = vmatpush2.msra.mxu0 0.0
        %1481 = vmatprep.subr.mxu0 0.0
        %1482 = vmatpush2.msra.mxu0 0.0
        %1483 = vmatprep.subr.mxu0 0.0
        %1484 = vmatpush2.msra.mxu0 0.0
        %1485 = vmatprep.subr.mxu0 0.0
        %1486 = vmatpush2.msra.mxu0 0.0
        %1487 = vmatprep.subr.mxu0 0.0
        %1488 = vmatpush2.msra.mxu0 0.0
        %1489 = vmatprep.subr.mxu0 0.0
        %1490 = vmatpush2.msra.mxu0 0.0
        %1491 = vmatprep.subr.mxu0 0.0
        %1492 = vmatpush2.msra.mxu0 0.0
        %1493 = vmatprep.subr.mxu0 0.0
        %1494 = vmatpush2.msra.mxu0 0.0
        %1495 = vmatprep.subr.mxu0 0.0
        %1496 = vmatpush2.msra.mxu0 0.0
        %1497 = vmatprep.subr.mxu0 0.0
        %1498 = vmatpush2.msra.mxu0 0.0
        %1499 = vmatprep.subr.mxu0 0.0
        %1500 = vmatpush2.msra.mxu0 0.0
        %1501 = vmatprep.subr.mxu0 0.0
        %1502 = vmatpush2.msra.mxu0 0.0
        %1503 = vmatprep.subr.mxu0 0.0
        %1504 = vmatpush2.msra.mxu0 0.0
        %1505 = vmatprep.mubr.f32.mxu0 0.0
        %1506 = vmatmul.mubr.f32.gmra.mxu0 %v1439
        %v1507 = vpop.f32.mrf.mxu0
        %v1508 = vadd.f32 0.0, %v1507
        %v1509 = vpop.f32.mrf.mxu0
        %1510 = vdwg.mxu0
        %v1511 = vadd.f32 %v1124, %v1508
        %1512 = vst [vmem:[%s350] sm:$0xff] %v1511
        %s1513 = sand.u32 %s247, 1
        %s1514 = scalar_lea.sflag [#allocation3], %s1513
        %s1515 = sand.u32 %s247, 1
        %s1516 = smul.addr %s1515, 8
        %s1517 = scalar_lea.vmem [#allocation2], %s1516
        // Predicated region
        $region61: #{tcn_block.1} parent=59 // pred_check
          %p1518 = pneg %p257
        $region62: #{tcn_block.1} parent=59 // pred_check_branch
          %1520 = sbr.rel (%p1518) target = $region64
        $region63: #{tcn_block.1} parent=59 // pred_region
          %s1522 = ssub.s32 128, 128
          %1523 = vsyncadd %s1514, %s1522
          %s1524 = smul.addr %s24, 128
          %s1525 = scalar_lea.hbm %s10, %s1524
          %s1527 = sshll.u32 %s1517, 4
          %s1528 = int_to_ptr.vmem [resolvable:$true] %s1527
          %1530 = dma.vmem_to_hbm [thread:$0]  %s1528, 128, %s1525, %s1514
        $region64: #{tcn_block.1} parent=59 // pred_fallthru
          _
      $region60: #{tcn_block.1} parent=5 // pred_fallthru
        _
      %p1531 = scmp.le.s32.totalorder 2, %s19
      // Predicated region
      $region65: #{tcn_block.1} parent=5 // pred_check
        %p1532 = pneg %p1531
      $region66: #{tcn_block.1} parent=5 // pred_check_branch
        %1534 = sbr.rel (%p1532) target = $region68
      $region67: #{tcn_block.1} parent=5 // pred_region
        %s1535 = ssub.s32 %s19, 2
        // Predicated region
        $region69: #{tcn_block.1} parent=67 // pred_check
          %p1536 = pneg %p263
        $region70: #{tcn_block.1} parent=67 // pred_check_branch
          %1538 = sbr.rel (%p1536) target = $region72
        $region71: #{tcn_block.1} parent=67 // pred_region
          %s1539 = sand.u32 %s248, 1
          %s1540 = scalar_lea.sflag [#allocation3], %s1539
          %s1541 = sand.u32 %s248, 1
          %s1542 = smul.addr %s1541, 8
          %s1543 = scalar_lea.vmem [#allocation2], %s1542
          %1544 = dma.done %s1540, 128
        $region72: #{tcn_block.1} parent=67 // pred_fallthru
          _
      $region68: #{tcn_block.1} parent=5 // pred_fallthru
        _
    $region6: #{tcn_block.1} parent=1 // loop_footer
      %s23 = sadd.s32 1, %s19
    $region7: #{tcn_block.1} parent=1 // loop_footer_branch
      %18 = sbr.rel target = $region3
    $region8: #{tcn_block.1} parent=1 // loop_exit
      _
    %1545 = vsyncpa [#allocation3], 1
    %s1546 = scalar_lea.sflag [#allocation3], 1
    %1547 = vsyncpa %s1546, 1

</llo_original>
